<compile_context>
chip_gen: v5e
topology: v5e:2x2
jax: 0.10.0
libtpu: 0.0.40
codegen_flags: <defaults>
</compile_context>

<pallas_src>
import functools

import jax
import jax.numpy as jnp
from jax.experimental import pallas as pl
from jax.experimental.pallas import tpu as pltpu

KSIZE = 7
PAD = 3


def _spatial_attention_kernel(w_ref, mask_ref, x_ref, o_ref, abuf_ref, mbuf_ref,
                              *, W, cchunk):
    # w_ref    : SMEM f32[98]    conv taps row-major; first 49 are the 'avg' channel
    #                            taps pre-multiplied by 1/C, last 49 the 'max' taps.
    # mask_ref : VMEM f32[7,HW]  per-column-offset validity masks (host-built).
    # x_ref    : VMEM (BB,C,HW)  input slab (lane-dense flat spatial).
    # o_ref    : VMEM (BB,C,HW)  output slab.
    # abuf/mbuf: VMEM (BB,1,L)   zero-padded flat sum/max map scratch, L = HW + 6W + 6.
    BB, C, HW = x_ref.shape
    D0 = PAD * W + PAD                       # where the HW map starts in the padded buffer
    nch = C // cchunk

    # ---- channel reduction (sum & max over C), chunked so nothing big stays live ----
    def load_chunk(i):
        return x_ref[:, i * cchunk:(i + 1) * cchunk, :].astype(jnp.float32)

    xc = load_chunk(0)
    s_map = jnp.sum(xc, axis=1, keepdims=True)        # (BB, 1, HW); 1/C folded into w
    m_map = jnp.max(xc, axis=1, keepdims=True)
    for i in range(1, nch):
        xc = load_chunk(i)
        s_map = s_map + jnp.sum(xc, axis=1, keepdims=True)
        m_map = jnp.maximum(m_map, jnp.max(xc, axis=1, keepdims=True))

    # ---- zero-padded flat maps in VMEM scratch (this is the conv halo) ----
    abuf_ref[...] = jnp.zeros_like(abuf_ref)
    mbuf_ref[...] = jnp.zeros_like(mbuf_ref)
    abuf_ref[:, :, D0:D0 + HW] = s_map
    mbuf_ref[:, :, D0:D0 + HW] = m_map

    # ---- 7x7 conv over the 2-channel [avg, max] map, flat layout ----
    # out[p] (p = y*W + x) needs padded2d[y+dy, x+dx] = buf[p + dy*W + dx]; rows
    # outside the image read zeros from the padding, columns outside are masked.
    parts = []
    for dx in range(KSIZE):
        acc_a = jnp.zeros((BB, 1, HW), jnp.float32)
        acc_m = jnp.zeros((BB, 1, HW), jnp.float32)
        for dy in range(KSIZE):
            off = dy * W + dx
            acc_a = acc_a + w_ref[dy * KSIZE + dx] * abuf_ref[:, :, off:off + HW]
            acc_m = acc_m + (w_ref[KSIZE * KSIZE + dy * KSIZE + dx]
                             * mbuf_ref[:, :, off:off + HW])
        part = acc_a + acc_m
        if dx != PAD:                        # the centre column never crosses a row edge
            part = part * mask_ref[dx:dx + 1, :]
        parts.append(part)
    conv = (((parts[0] + parts[1]) + (parts[2] + parts[3]))
            + ((parts[4] + parts[5]) + parts[6]))

    # ---- sigmoid + broadcast multiply; re-read x in chunks for the lane-dense store --
    scale = jax.nn.sigmoid(conv)             # (BB, 1, HW)
    for i in range(nch):
        lo, hi = i * cchunk, (i + 1) * cchunk
        o_ref[:, lo:hi, :] = (x_ref[:, lo:hi, :].astype(jnp.float32)
                              * scale).astype(o_ref.dtype)


def _pick_block_batch(n, bytes_per_batch, budget_bytes=2 << 20):
    """Largest divisor of n whose input block fits the budget, keeping >=2 grid steps
    (when n >= 2) so both v7x TensorCores get work."""
    bb = 1
    for cand in range(1, n + 1):
        if n % cand:
            continue
        if cand * bytes_per_batch > budget_bytes:
            break
        if n >= 2 and n // cand < 2:
            continue
        bb = cand
    return bb


def spatial_attention(x, conv_w, *, block_batch=None):
    """CBAM SpatialAttention forward.  x: (N, C, H, W); conv_w: (1, 2, 7, 7), no bias."""
    N, C, H, W = x.shape
    HW = H * W
    L = HW + (KSIZE - 1) * W + 2 * PAD               # padded flat map length

    # Fold the 1/C of the channel mean into the 'avg' half of the conv weights.
    w_flat = jnp.concatenate([
        (conv_w[0, 0].astype(jnp.float32) / float(C)).reshape(-1),
        conv_w[0, 1].astype(jnp.float32).reshape(-1),
    ])                                               # (98,)

    # Per-column-offset validity masks for the flat-layout conv (built once on host).
    col = jnp.arange(HW, dtype=jnp.int32) % W
    masks = jnp.stack(
        [((col + (dx - PAD) >= 0) & (col + (dx - PAD) < W)).astype(jnp.float32)
         for dx in range(KSIZE)], axis=0)            # (7, HW)

    x_flat = x.reshape(N, C, HW)                     # contiguous reshape: no HBM rewrite

    if block_batch is None:
        block_batch = _pick_block_batch(N, C * HW * x.dtype.itemsize)
    BB = block_batch
    assert N % BB == 0, "block_batch must divide the batch"

    cchunk = 8 if C % 8 == 0 else C                  # channel chunk for reduce/multiply

    kernel = functools.partial(_spatial_attention_kernel, W=W, cchunk=cchunk)

    out_flat = pl.pallas_call(
        kernel,
        out_shape=jax.ShapeDtypeStruct((N, C, HW), x.dtype),
        grid=(N // BB,),
        in_specs=[
            pl.BlockSpec(memory_space=pltpu.MemorySpace.SMEM),      # conv weights
            pl.BlockSpec((KSIZE, HW), lambda b: (0, 0)),            # column masks
            pl.BlockSpec((BB, C, HW), lambda b: (b, 0, 0)),         # x slab
        ],
        out_specs=pl.BlockSpec((BB, C, HW), lambda b: (b, 0, 0)),
        scratch_shapes=[
            pltpu.VMEM((BB, 1, L), jnp.float32),                    # padded flat sum map
            pltpu.VMEM((BB, 1, L), jnp.float32),                    # padded flat max map
        ],
        compiler_params=pltpu.CompilerParams(
            dimension_semantics=("parallel",),
            vmem_limit_bytes=32 * 1024 * 1024,
        ),
    )(w_flat, masks, x_flat)
    # TODO(synk): for very large C*H*W (a single batch element of many MiB) add a
    # channel/spatial-tiled two-pass variant so one block never nears v7x's 64 MiB VMEM.
    return out_flat.reshape(N, C, H, W)


def spatial_attention_reference(x, conv_w):
    avg = jnp.mean(x, axis=1, keepdims=True)
    mx = jnp.max(x, axis=1, keepdims=True)
    cat = jnp.concatenate([avg, mx], axis=1)
    out = jax.lax.conv_general_dilated(
        cat, conv_w.astype(x.dtype), window_strides=(1, 1),
        padding=((PAD, PAD), (PAD, PAD)),
        dimension_numbers=("NCHW", "OIHW", "NCHW"))
    return x * jax.nn.sigmoid(out)


if __name__ == "__main__":
    key = jax.random.PRNGKey(0)
    kx, kw = jax.random.split(key)

    # Small shapes consistent with the module's forward: NCHW.
    x = jax.random.normal(kx, (2, 4, 16, 16), dtype=jnp.float32)

    # Deterministic conv weight init (Kaiming-uniform-like bound), shape (1, 2, 7, 7).
    fan_in = 2 * KSIZE * KSIZE
    bound = 1.0 / (fan_in ** 0.5)
    conv_w = jax.random.uniform(kw, (1, 2, KSIZE, KSIZE), jnp.float32, -bound, bound)

    y = spatial_attention(x, conv_w)
    jax.block_until_ready(y)

    y_ref = spatial_attention_reference(x, conv_w)
    assert y.shape == x.shape
    assert jnp.allclose(y, y_ref, atol=1e-5, rtol=1e-5), "mismatch vs reference"

    print("KERNEL_OK")
</pallas_src>

<mosaic_0001>
module attributes {stable_mosaic.version = 11 : i64} {
  func.func @_spatial_attention_kernel(%arg0: i32, %arg1: memref<98xf32, #tpu.memory_space<smem>>, %arg2: memref<7x256xf32, #tpu.memory_space<vmem>>, %arg3: memref<1x4x256xf32, #tpu.memory_space<vmem>>, %arg4: memref<1x4x256xf32, #tpu.memory_space<vmem>>, %arg5: memref<1x1x358xf32, #tpu.memory_space<vmem>>, %arg6: memref<1x1x358xf32, #tpu.memory_space<vmem>>) attributes {dimension_semantics = [#tpu.dimension_semantics<parallel>], iteration_bounds = array<i64: 2>, scalar_prefetch = 0 : i64, scratch_operands = 2 : i64, tpu.core_type = #tpu.core_type<tc>, window_params = [{transform_indices = @transform_0, window_bounds = array<i64: 98>}, {pipeline_mode = #tpu.pipeline_mode<synchronous>, transform_indices = @transform_1, window_bounds = array<i64: 7, 256>}, {transform_indices = @transform_2, window_bounds = array<i64: 1, 4, 256>}, {transform_indices = @transform_3, window_bounds = array<i64: 1, 4, 256>}]} {
    %c0 = arith.constant 0 : index
    %c0_0 = arith.constant 0 : index
    %c0_1 = arith.constant 0 : index
    %0 = vector.load %arg3[%c0, %c0_0, %c0_1] : memref<1x4x256xf32, #tpu.memory_space<vmem>>, vector<1x4x256xf32>
    %cst = arith.constant dense<0.000000e+00> : vector<1x256xf32>
    %1 = vector.multi_reduction <add>, %0, %cst [1] : vector<1x4x256xf32> to vector<1x256xf32>
    %2 = vector.shape_cast %1 : vector<1x256xf32> to vector<1x1x256xf32>
    %cst_2 = arith.constant dense<0xFF800000> : vector<1x256xf32>
    %3 = vector.multi_reduction <maximumf>, %0, %cst_2 [1] : vector<1x4x256xf32> to vector<1x256xf32>
    %4 = vector.shape_cast %3 : vector<1x256xf32> to vector<1x1x256xf32>
    %cst_3 = arith.constant 0.000000e+00 : f32
    %5 = vector.broadcast %cst_3 : f32 to vector<1x1x358xf32>
    %c0_4 = arith.constant 0 : index
    %c0_5 = arith.constant 0 : index
    %c0_6 = arith.constant 0 : index
    %6 = vector.load %arg5[%c0_4, %c0_5, %c0_6] : memref<1x1x358xf32, #tpu.memory_space<vmem>>, vector<1x1x358xf32>
    tpu.vector_store %arg5[%c0_4, %c0_5, %c0_6], %5 {strides = array<i32>} : memref<1x1x358xf32, #tpu.memory_space<vmem>>, vector<1x1x358xf32>,
    %cst_7 = arith.constant 0.000000e+00 : f32
    %7 = vector.broadcast %cst_7 : f32 to vector<1x1x358xf32>
    %c0_8 = arith.constant 0 : index
    %c0_9 = arith.constant 0 : index
    %c0_10 = arith.constant 0 : index
    %8 = vector.load %arg6[%c0_8, %c0_9, %c0_10] : memref<1x1x358xf32, #tpu.memory_space<vmem>>, vector<1x1x358xf32>
    tpu.vector_store %arg6[%c0_8, %c0_9, %c0_10], %7 {strides = array<i32>} : memref<1x1x358xf32, #tpu.memory_space<vmem>>, vector<1x1x358xf32>,
    %c0_11 = arith.constant 0 : index
    %c0_12 = arith.constant 0 : index
    %c51 = arith.constant 51 : index
    %9 = vector.load %arg5[%c0_11, %c0_12, %c51] : memref<1x1x358xf32, #tpu.memory_space<vmem>>, vector<1x1x256xf32>
    tpu.vector_store %arg5[%c0_11, %c0_12, %c51], %2 {strides = array<i32>} : memref<1x1x358xf32, #tpu.memory_space<vmem>>, vector<1x1x256xf32>,
    %c0_13 = arith.constant 0 : index
    %c0_14 = arith.constant 0 : index
    %c51_15 = arith.constant 51 : index
    %10 = vector.load %arg6[%c0_13, %c0_14, %c51_15] : memref<1x1x358xf32, #tpu.memory_space<vmem>>, vector<1x1x256xf32>
    tpu.vector_store %arg6[%c0_13, %c0_14, %c51_15], %4 {strides = array<i32>} : memref<1x1x358xf32, #tpu.memory_space<vmem>>, vector<1x1x256xf32>,
    %cst_16 = arith.constant 0.000000e+00 : f32
    %11 = vector.broadcast %cst_16 : f32 to vector<1x1x256xf32>
    %cst_17 = arith.constant 0.000000e+00 : f32
    %12 = vector.broadcast %cst_17 : f32 to vector<1x1x256xf32>
    %c0_18 = arith.constant 0 : index
    %13 = memref.load %arg1[%c0_18] : memref<98xf32, #tpu.memory_space<smem>>
    %c0_19 = arith.constant 0 : index
    %c0_20 = arith.constant 0 : index
    %c0_21 = arith.constant 0 : index
    %14 = vector.load %arg5[%c0_19, %c0_20, %c0_21] : memref<1x1x358xf32, #tpu.memory_space<vmem>>, vector<1x1x256xf32>
    %15 = vector.broadcast %13 : f32 to vector<1x1x256xf32>
    %16 = arith.mulf %15, %14 : vector<1x1x256xf32>
    %17 = arith.addf %11, %16 : vector<1x1x256xf32>
    %c49 = arith.constant 49 : index
    %18 = memref.load %arg1[%c49] : memref<98xf32, #tpu.memory_space<smem>>
    %c0_22 = arith.constant 0 : index
    %c0_23 = arith.constant 0 : index
    %c0_24 = arith.constant 0 : index
    %19 = vector.load %arg6[%c0_22, %c0_23, %c0_24] : memref<1x1x358xf32, #tpu.memory_space<vmem>>, vector<1x1x256xf32>
    %20 = vector.broadcast %18 : f32 to vector<1x1x256xf32>
    %21 = arith.mulf %20, %19 : vector<1x1x256xf32>
    %22 = arith.addf %12, %21 : vector<1x1x256xf32>
    %c7 = arith.constant 7 : index
    %23 = memref.load %arg1[%c7] : memref<98xf32, #tpu.memory_space<smem>>
    %c0_25 = arith.constant 0 : index
    %c0_26 = arith.constant 0 : index
    %c16 = arith.constant 16 : index
    %24 = vector.load %arg5[%c0_25, %c0_26, %c16] : memref<1x1x358xf32, #tpu.memory_space<vmem>>, vector<1x1x256xf32>
    %25 = vector.broadcast %23 : f32 to vector<1x1x256xf32>
    %26 = arith.mulf %25, %24 : vector<1x1x256xf32>
    %27 = arith.addf %17, %26 : vector<1x1x256xf32>
    %c56 = arith.constant 56 : index
    %28 = memref.load %arg1[%c56] : memref<98xf32, #tpu.memory_space<smem>>
    %c0_27 = arith.constant 0 : index
    %c0_28 = arith.constant 0 : index
    %c16_29 = arith.constant 16 : index
    %29 = vector.load %arg6[%c0_27, %c0_28, %c16_29] : memref<1x1x358xf32, #tpu.memory_space<vmem>>, vector<1x1x256xf32>
    %30 = vector.broadcast %28 : f32 to vector<1x1x256xf32>
    %31 = arith.mulf %30, %29 : vector<1x1x256xf32>
    %32 = arith.addf %22, %31 : vector<1x1x256xf32>
    %c14 = arith.constant 14 : index
    %33 = memref.load %arg1[%c14] : memref<98xf32, #tpu.memory_space<smem>>
    %c0_30 = arith.constant 0 : index
    %c0_31 = arith.constant 0 : index
    %c32 = arith.constant 32 : index
    %34 = vector.load %arg5[%c0_30, %c0_31, %c32] : memref<1x1x358xf32, #tpu.memory_space<vmem>>, vector<1x1x256xf32>
    %35 = vector.broadcast %33 : f32 to vector<1x1x256xf32>
    %36 = arith.mulf %35, %34 : vector<1x1x256xf32>
    %37 = arith.addf %27, %36 : vector<1x1x256xf32>
    %c63 = arith.constant 63 : index
    %38 = memref.load %arg1[%c63] : memref<98xf32, #tpu.memory_space<smem>>
    %c0_32 = arith.constant 0 : index
    %c0_33 = arith.constant 0 : index
    %c32_34 = arith.constant 32 : index
    %39 = vector.load %arg6[%c0_32, %c0_33, %c32_34] : memref<1x1x358xf32, #tpu.memory_space<vmem>>, vector<1x1x256xf32>
    %40 = vector.broadcast %38 : f32 to vector<1x1x256xf32>
    %41 = arith.mulf %40, %39 : vector<1x1x256xf32>
    %42 = arith.addf %32, %41 : vector<1x1x256xf32>
    %c21 = arith.constant 21 : index
    %43 = memref.load %arg1[%c21] : memref<98xf32, #tpu.memory_space<smem>>
    %c0_35 = arith.constant 0 : index
    %c0_36 = arith.constant 0 : index
    %c48 = arith.constant 48 : index
    %44 = vector.load %arg5[%c0_35, %c0_36, %c48] : memref<1x1x358xf32, #tpu.memory_space<vmem>>, vector<1x1x256xf32>
    %45 = vector.broadcast %43 : f32 to vector<1x1x256xf32>
    %46 = arith.mulf %45, %44 : vector<1x1x256xf32>
    %47 = arith.addf %37, %46 : vector<1x1x256xf32>
    %c70 = arith.constant 70 : index
    %48 = memref.load %arg1[%c70] : memref<98xf32, #tpu.memory_space<smem>>
    %c0_37 = arith.constant 0 : index
    %c0_38 = arith.constant 0 : index
    %c48_39 = arith.constant 48 : index
    %49 = vector.load %arg6[%c0_37, %c0_38, %c48_39] : memref<1x1x358xf32, #tpu.memory_space<vmem>>, vector<1x1x256xf32>
    %50 = vector.broadcast %48 : f32 to vector<1x1x256xf32>
    %51 = arith.mulf %50, %49 : vector<1x1x256xf32>
    %52 = arith.addf %42, %51 : vector<1x1x256xf32>
    %c28 = arith.constant 28 : index
    %53 = memref.load %arg1[%c28] : memref<98xf32, #tpu.memory_space<smem>>
    %c0_40 = arith.constant 0 : index
    %c0_41 = arith.constant 0 : index
    %c64 = arith.constant 64 : index
    %54 = vector.load %arg5[%c0_40, %c0_41, %c64] : memref<1x1x358xf32, #tpu.memory_space<vmem>>, vector<1x1x256xf32>
    %55 = vector.broadcast %53 : f32 to vector<1x1x256xf32>
    %56 = arith.mulf %55, %54 : vector<1x1x256xf32>
    %57 = arith.addf %47, %56 : vector<1x1x256xf32>
    %c77 = arith.constant 77 : index
    %58 = memref.load %arg1[%c77] : memref<98xf32, #tpu.memory_space<smem>>
    %c0_42 = arith.constant 0 : index
    %c0_43 = arith.constant 0 : index
    %c64_44 = arith.constant 64 : index
    %59 = vector.load %arg6[%c0_42, %c0_43, %c64_44] : memref<1x1x358xf32, #tpu.memory_space<vmem>>, vector<1x1x256xf32>
    %60 = vector.broadcast %58 : f32 to vector<1x1x256xf32>
    %61 = arith.mulf %60, %59 : vector<1x1x256xf32>
    %62 = arith.addf %52, %61 : vector<1x1x256xf32>
    %c35 = arith.constant 35 : index
    %63 = memref.load %arg1[%c35] : memref<98xf32, #tpu.memory_space<smem>>
    %c0_45 = arith.constant 0 : index
    %c0_46 = arith.constant 0 : index
    %c80 = arith.constant 80 : index
    %64 = vector.load %arg5[%c0_45, %c0_46, %c80] : memref<1x1x358xf32, #tpu.memory_space<vmem>>, vector<1x1x256xf32>
    %65 = vector.broadcast %63 : f32 to vector<1x1x256xf32>
    %66 = arith.mulf %65, %64 : vector<1x1x256xf32>
    %67 = arith.addf %57, %66 : vector<1x1x256xf32>
    %c84 = arith.constant 84 : index
    %68 = memref.load %arg1[%c84] : memref<98xf32, #tpu.memory_space<smem>>
    %c0_47 = arith.constant 0 : index
    %c0_48 = arith.constant 0 : index
    %c80_49 = arith.constant 80 : index
    %69 = vector.load %arg6[%c0_47, %c0_48, %c80_49] : memref<1x1x358xf32, #tpu.memory_space<vmem>>, vector<1x1x256xf32>
    %70 = vector.broadcast %68 : f32 to vector<1x1x256xf32>
    %71 = arith.mulf %70, %69 : vector<1x1x256xf32>
    %72 = arith.addf %62, %71 : vector<1x1x256xf32>
    %c42 = arith.constant 42 : index
    %73 = memref.load %arg1[%c42] : memref<98xf32, #tpu.memory_space<smem>>
    %c0_50 = arith.constant 0 : index
    %c0_51 = arith.constant 0 : index
    %c96 = arith.constant 96 : index
    %74 = vector.load %arg5[%c0_50, %c0_51, %c96] : memref<1x1x358xf32, #tpu.memory_space<vmem>>, vector<1x1x256xf32>
    %75 = vector.broadcast %73 : f32 to vector<1x1x256xf32>
    %76 = arith.mulf %75, %74 : vector<1x1x256xf32>
    %77 = arith.addf %67, %76 : vector<1x1x256xf32>
    %c91 = arith.constant 91 : index
    %78 = memref.load %arg1[%c91] : memref<98xf32, #tpu.memory_space<smem>>
    %c0_52 = arith.constant 0 : index
    %c0_53 = arith.constant 0 : index
    %c96_54 = arith.constant 96 : index
    %79 = vector.load %arg6[%c0_52, %c0_53, %c96_54] : memref<1x1x358xf32, #tpu.memory_space<vmem>>, vector<1x1x256xf32>
    %80 = vector.broadcast %78 : f32 to vector<1x1x256xf32>
    %81 = arith.mulf %80, %79 : vector<1x1x256xf32>
    %82 = arith.addf %72, %81 : vector<1x1x256xf32>
    %83 = arith.addf %77, %82 : vector<1x1x256xf32>
    %c0_55 = arith.constant 0 : index
    %c0_56 = arith.constant 0 : index
    %84 = vector.load %arg2[%c0_55, %c0_56] : memref<7x256xf32, #tpu.memory_space<vmem>>, vector<1x256xf32>
    %85 = vector.shape_cast %84 : vector<1x256xf32> to vector<1x1x256xf32>
    %86 = arith.mulf %83, %85 : vector<1x1x256xf32>
    %cst_57 = arith.constant 0.000000e+00 : f32
    %87 = vector.broadcast %cst_57 : f32 to vector<1x1x256xf32>
    %cst_58 = arith.constant 0.000000e+00 : f32
    %88 = vector.broadcast %cst_58 : f32 to vector<1x1x256xf32>
    %c1 = arith.constant 1 : index
    %89 = memref.load %arg1[%c1] : memref<98xf32, #tpu.memory_space<smem>>
    %c0_59 = arith.constant 0 : index
    %c0_60 = arith.constant 0 : index
    %c1_61 = arith.constant 1 : index
    %90 = vector.load %arg5[%c0_59, %c0_60, %c1_61] : memref<1x1x358xf32, #tpu.memory_space<vmem>>, vector<1x1x256xf32>
    %91 = vector.broadcast %89 : f32 to vector<1x1x256xf32>
    %92 = arith.mulf %91, %90 : vector<1x1x256xf32>
    %93 = arith.addf %87, %92 : vector<1x1x256xf32>
    %c50 = arith.constant 50 : index
    %94 = memref.load %arg1[%c50] : memref<98xf32, #tpu.memory_space<smem>>
    %c0_62 = arith.constant 0 : index
    %c0_63 = arith.constant 0 : index
    %c1_64 = arith.constant 1 : index
    %95 = vector.load %arg6[%c0_62, %c0_63, %c1_64] : memref<1x1x358xf32, #tpu.memory_space<vmem>>, vector<1x1x256xf32>
    %96 = vector.broadcast %94 : f32 to vector<1x1x256xf32>
    %97 = arith.mulf %96, %95 : vector<1x1x256xf32>
    %98 = arith.addf %88, %97 : vector<1x1x256xf32>
    %c8 = arith.constant 8 : index
    %99 = memref.load %arg1[%c8] : memref<98xf32, #tpu.memory_space<smem>>
    %c0_65 = arith.constant 0 : index
    %c0_66 = arith.constant 0 : index
    %c17 = arith.constant 17 : index
    %100 = vector.load %arg5[%c0_65, %c0_66, %c17] : memref<1x1x358xf32, #tpu.memory_space<vmem>>, vector<1x1x256xf32>
    %101 = vector.broadcast %99 : f32 to vector<1x1x256xf32>
    %102 = arith.mulf %101, %100 : vector<1x1x256xf32>
    %103 = arith.addf %93, %102 : vector<1x1x256xf32>
    %c57 = arith.constant 57 : index
    %104 = memref.load %arg1[%c57] : memref<98xf32, #tpu.memory_space<smem>>
    %c0_67 = arith.constant 0 : index
    %c0_68 = arith.constant 0 : index
    %c17_69 = arith.constant 17 : index
    %105 = vector.load %arg6[%c0_67, %c0_68, %c17_69] : memref<1x1x358xf32, #tpu.memory_space<vmem>>, vector<1x1x256xf32>
    %106 = vector.broadcast %104 : f32 to vector<1x1x256xf32>
    %107 = arith.mulf %106, %105 : vector<1x1x256xf32>
    %108 = arith.addf %98, %107 : vector<1x1x256xf32>
    %c15 = arith.constant 15 : index
    %109 = memref.load %arg1[%c15] : memref<98xf32, #tpu.memory_space<smem>>
    %c0_70 = arith.constant 0 : index
    %c0_71 = arith.constant 0 : index
    %c33 = arith.constant 33 : index
    %110 = vector.load %arg5[%c0_70, %c0_71, %c33] : memref<1x1x358xf32, #tpu.memory_space<vmem>>, vector<1x1x256xf32>
    %111 = vector.broadcast %109 : f32 to vector<1x1x256xf32>
    %112 = arith.mulf %111, %110 : vector<1x1x256xf32>
    %113 = arith.addf %103, %112 : vector<1x1x256xf32>
    %c64_72 = arith.constant 64 : index
    %114 = memref.load %arg1[%c64_72] : memref<98xf32, #tpu.memory_space<smem>>
    %c0_73 = arith.constant 0 : index
    %c0_74 = arith.constant 0 : index
    %c33_75 = arith.constant 33 : index
    %115 = vector.load %arg6[%c0_73, %c0_74, %c33_75] : memref<1x1x358xf32, #tpu.memory_space<vmem>>, vector<1x1x256xf32>
    %116 = vector.broadcast %114 : f32 to vector<1x1x256xf32>
    %117 = arith.mulf %116, %115 : vector<1x1x256xf32>
    %118 = arith.addf %108, %117 : vector<1x1x256xf32>
    %c22 = arith.constant 22 : index
    %119 = memref.load %arg1[%c22] : memref<98xf32, #tpu.memory_space<smem>>
    %c0_76 = arith.constant 0 : index
    %c0_77 = arith.constant 0 : index
    %c49_78 = arith.constant 49 : index
    %120 = vector.load %arg5[%c0_76, %c0_77, %c49_78] : memref<1x1x358xf32, #tpu.memory_space<vmem>>, vector<1x1x256xf32>
    %121 = vector.broadcast %119 : f32 to vector<1x1x256xf32>
    %122 = arith.mulf %121, %120 : vector<1x1x256xf32>
    %123 = arith.addf %113, %122 : vector<1x1x256xf32>
    %c71 = arith.constant 71 : index
    %124 = memref.load %arg1[%c71] : memref<98xf32, #tpu.memory_space<smem>>
    %c0_79 = arith.constant 0 : index
    %c0_80 = arith.constant 0 : index
    %c49_81 = arith.constant 49 : index
    %125 = vector.load %arg6[%c0_79, %c0_80, %c49_81] : memref<1x1x358xf32, #tpu.memory_space<vmem>>, vector<1x1x256xf32>
    %126 = vector.broadcast %124 : f32 to vector<1x1x256xf32>
    %127 = arith.mulf %126, %125 : vector<1x1x256xf32>
    %128 = arith.addf %118, %127 : vector<1x1x256xf32>
    %c29 = arith.constant 29 : index
    %129 = memref.load %arg1[%c29] : memref<98xf32, #tpu.memory_space<smem>>
    %c0_82 = arith.constant 0 : index
    %c0_83 = arith.constant 0 : index
    %c65 = arith.constant 65 : index
    %130 = vector.load %arg5[%c0_82, %c0_83, %c65] : memref<1x1x358xf32, #tpu.memory_space<vmem>>, vector<1x1x256xf32>
    %131 = vector.broadcast %129 : f32 to vector<1x1x256xf32>
    %132 = arith.mulf %131, %130 : vector<1x1x256xf32>
    %133 = arith.addf %123, %132 : vector<1x1x256xf32>
    %c78 = arith.constant 78 : index
    %134 = memref.load %arg1[%c78] : memref<98xf32, #tpu.memory_space<smem>>
    %c0_84 = arith.constant 0 : index
    %c0_85 = arith.constant 0 : index
    %c65_86 = arith.constant 65 : index
    %135 = vector.load %arg6[%c0_84, %c0_85, %c65_86] : memref<1x1x358xf32, #tpu.memory_space<vmem>>, vector<1x1x256xf32>
    %136 = vector.broadcast %134 : f32 to vector<1x1x256xf32>
    %137 = arith.mulf %136, %135 : vector<1x1x256xf32>
    %138 = arith.addf %128, %137 : vector<1x1x256xf32>
    %c36 = arith.constant 36 : index
    %139 = memref.load %arg1[%c36] : memref<98xf32, #tpu.memory_space<smem>>
    %c0_87 = arith.constant 0 : index
    %c0_88 = arith.constant 0 : index
    %c81 = arith.constant 81 : index
    %140 = vector.load %arg5[%c0_87, %c0_88, %c81] : memref<1x1x358xf32, #tpu.memory_space<vmem>>, vector<1x1x256xf32>
    %141 = vector.broadcast %139 : f32 to vector<1x1x256xf32>
    %142 = arith.mulf %141, %140 : vector<1x1x256xf32>
    %143 = arith.addf %133, %142 : vector<1x1x256xf32>
    %c85 = arith.constant 85 : index
    %144 = memref.load %arg1[%c85] : memref<98xf32, #tpu.memory_space<smem>>
    %c0_89 = arith.constant 0 : index
    %c0_90 = arith.constant 0 : index
    %c81_91 = arith.constant 81 : index
    %145 = vector.load %arg6[%c0_89, %c0_90, %c81_91] : memref<1x1x358xf32, #tpu.memory_space<vmem>>, vector<1x1x256xf32>
    %146 = vector.broadcast %144 : f32 to vector<1x1x256xf32>
    %147 = arith.mulf %146, %145 : vector<1x1x256xf32>
    %148 = arith.addf %138, %147 : vector<1x1x256xf32>
    %c43 = arith.constant 43 : index
    %149 = memref.load %arg1[%c43] : memref<98xf32, #tpu.memory_space<smem>>
    %c0_92 = arith.constant 0 : index
    %c0_93 = arith.constant 0 : index
    %c97 = arith.constant 97 : index
    %150 = vector.load %arg5[%c0_92, %c0_93, %c97] : memref<1x1x358xf32, #tpu.memory_space<vmem>>, vector<1x1x256xf32>
    %151 = vector.broadcast %149 : f32 to vector<1x1x256xf32>
    %152 = arith.mulf %151, %150 : vector<1x1x256xf32>
    %153 = arith.addf %143, %152 : vector<1x1x256xf32>
    %c92 = arith.constant 92 : index
    %154 = memref.load %arg1[%c92] : memref<98xf32, #tpu.memory_space<smem>>
    %c0_94 = arith.constant 0 : index
    %c0_95 = arith.constant 0 : index
    %c97_96 = arith.constant 97 : index
    %155 = vector.load %arg6[%c0_94, %c0_95, %c97_96] : memref<1x1x358xf32, #tpu.memory_space<vmem>>, vector<1x1x256xf32>
    %156 = vector.broadcast %154 : f32 to vector<1x1x256xf32>
    %157 = arith.mulf %156, %155 : vector<1x1x256xf32>
    %158 = arith.addf %148, %157 : vector<1x1x256xf32>
    %159 = arith.addf %153, %158 : vector<1x1x256xf32>
    %c1_97 = arith.constant 1 : index
    %c0_98 = arith.constant 0 : index
    %160 = vector.load %arg2[%c1_97, %c0_98] : memref<7x256xf32, #tpu.memory_space<vmem>>, vector<1x256xf32>
    %161 = vector.shape_cast %160 : vector<1x256xf32> to vector<1x1x256xf32>
    %162 = arith.mulf %159, %161 : vector<1x1x256xf32>
    %cst_99 = arith.constant 0.000000e+00 : f32
    %163 = vector.broadcast %cst_99 : f32 to vector<1x1x256xf32>
    %cst_100 = arith.constant 0.000000e+00 : f32
    %164 = vector.broadcast %cst_100 : f32 to vector<1x1x256xf32>
    %c2 = arith.constant 2 : index
    %165 = memref.load %arg1[%c2] : memref<98xf32, #tpu.memory_space<smem>>
    %c0_101 = arith.constant 0 : index
    %c0_102 = arith.constant 0 : index
    %c2_103 = arith.constant 2 : index
    %166 = vector.load %arg5[%c0_101, %c0_102, %c2_103] : memref<1x1x358xf32, #tpu.memory_space<vmem>>, vector<1x1x256xf32>
    %167 = vector.broadcast %165 : f32 to vector<1x1x256xf32>
    %168 = arith.mulf %167, %166 : vector<1x1x256xf32>
    %169 = arith.addf %163, %168 : vector<1x1x256xf32>
    %c51_104 = arith.constant 51 : index
    %170 = memref.load %arg1[%c51_104] : memref<98xf32, #tpu.memory_space<smem>>
    %c0_105 = arith.constant 0 : index
    %c0_106 = arith.constant 0 : index
    %c2_107 = arith.constant 2 : index
    %171 = vector.load %arg6[%c0_105, %c0_106, %c2_107] : memref<1x1x358xf32, #tpu.memory_space<vmem>>, vector<1x1x256xf32>
    %172 = vector.broadcast %170 : f32 to vector<1x1x256xf32>
    %173 = arith.mulf %172, %171 : vector<1x1x256xf32>
    %174 = arith.addf %164, %173 : vector<1x1x256xf32>
    %c9 = arith.constant 9 : index
    %175 = memref.load %arg1[%c9] : memref<98xf32, #tpu.memory_space<smem>>
    %c0_108 = arith.constant 0 : index
    %c0_109 = arith.constant 0 : index
    %c18 = arith.constant 18 : index
    %176 = vector.load %arg5[%c0_108, %c0_109, %c18] : memref<1x1x358xf32, #tpu.memory_space<vmem>>, vector<1x1x256xf32>
    %177 = vector.broadcast %175 : f32 to vector<1x1x256xf32>
    %178 = arith.mulf %177, %176 : vector<1x1x256xf32>
    %179 = arith.addf %169, %178 : vector<1x1x256xf32>
    %c58 = arith.constant 58 : index
    %180 = memref.load %arg1[%c58] : memref<98xf32, #tpu.memory_space<smem>>
    %c0_110 = arith.constant 0 : index
    %c0_111 = arith.constant 0 : index
    %c18_112 = arith.constant 18 : index
    %181 = vector.load %arg6[%c0_110, %c0_111, %c18_112] : memref<1x1x358xf32, #tpu.memory_space<vmem>>, vector<1x1x256xf32>
    %182 = vector.broadcast %180 : f32 to vector<1x1x256xf32>
    %183 = arith.mulf %182, %181 : vector<1x1x256xf32>
    %184 = arith.addf %174, %183 : vector<1x1x256xf32>
    %c16_113 = arith.constant 16 : index
    %185 = memref.load %arg1[%c16_113] : memref<98xf32, #tpu.memory_space<smem>>
    %c0_114 = arith.constant 0 : index
    %c0_115 = arith.constant 0 : index
    %c34 = arith.constant 34 : index
    %186 = vector.load %arg5[%c0_114, %c0_115, %c34] : memref<1x1x358xf32, #tpu.memory_space<vmem>>, vector<1x1x256xf32>
    %187 = vector.broadcast %185 : f32 to vector<1x1x256xf32>
    %188 = arith.mulf %187, %186 : vector<1x1x256xf32>
    %189 = arith.addf %179, %188 : vector<1x1x256xf32>
    %c65_116 = arith.constant 65 : index
    %190 = memref.load %arg1[%c65_116] : memref<98xf32, #tpu.memory_space<smem>>
    %c0_117 = arith.constant 0 : index
    %c0_118 = arith.constant 0 : index
    %c34_119 = arith.constant 34 : index
    %191 = vector.load %arg6[%c0_117, %c0_118, %c34_119] : memref<1x1x358xf32, #tpu.memory_space<vmem>>, vector<1x1x256xf32>
    %192 = vector.broadcast %190 : f32 to vector<1x1x256xf32>
    %193 = arith.mulf %192, %191 : vector<1x1x256xf32>
    %194 = arith.addf %184, %193 : vector<1x1x256xf32>
    %c23 = arith.constant 23 : index
    %195 = memref.load %arg1[%c23] : memref<98xf32, #tpu.memory_space<smem>>
    %c0_120 = arith.constant 0 : index
    %c0_121 = arith.constant 0 : index
    %c50_122 = arith.constant 50 : index
    %196 = vector.load %arg5[%c0_120, %c0_121, %c50_122] : memref<1x1x358xf32, #tpu.memory_space<vmem>>, vector<1x1x256xf32>
    %197 = vector.broadcast %195 : f32 to vector<1x1x256xf32>
    %198 = arith.mulf %197, %196 : vector<1x1x256xf32>
    %199 = arith.addf %189, %198 : vector<1x1x256xf32>
    %c72 = arith.constant 72 : index
    %200 = memref.load %arg1[%c72] : memref<98xf32, #tpu.memory_space<smem>>
    %c0_123 = arith.constant 0 : index
    %c0_124 = arith.constant 0 : index
    %c50_125 = arith.constant 50 : index
    %201 = vector.load %arg6[%c0_123, %c0_124, %c50_125] : memref<1x1x358xf32, #tpu.memory_space<vmem>>, vector<1x1x256xf32>
    %202 = vector.broadcast %200 : f32 to vector<1x1x256xf32>
    %203 = arith.mulf %202, %201 : vector<1x1x256xf32>
    %204 = arith.addf %194, %203 : vector<1x1x256xf32>
    %c30 = arith.constant 30 : index
    %205 = memref.load %arg1[%c30] : memref<98xf32, #tpu.memory_space<smem>>
    %c0_126 = arith.constant 0 : index
    %c0_127 = arith.constant 0 : index
    %c66 = arith.constant 66 : index
    %206 = vector.load %arg5[%c0_126, %c0_127, %c66] : memref<1x1x358xf32, #tpu.memory_space<vmem>>, vector<1x1x256xf32>
    %207 = vector.broadcast %205 : f32 to vector<1x1x256xf32>
    %208 = arith.mulf %207, %206 : vector<1x1x256xf32>
    %209 = arith.addf %199, %208 : vector<1x1x256xf32>
    %c79 = arith.constant 79 : index
    %210 = memref.load %arg1[%c79] : memref<98xf32, #tpu.memory_space<smem>>
    %c0_128 = arith.constant 0 : index
    %c0_129 = arith.constant 0 : index
    %c66_130 = arith.constant 66 : index
    %211 = vector.load %arg6[%c0_128, %c0_129, %c66_130] : memref<1x1x358xf32, #tpu.memory_space<vmem>>, vector<1x1x256xf32>
    %212 = vector.broadcast %210 : f32 to vector<1x1x256xf32>
    %213 = arith.mulf %212, %211 : vector<1x1x256xf32>
    %214 = arith.addf %204, %213 : vector<1x1x256xf32>
    %c37 = arith.constant 37 : index
    %215 = memref.load %arg1[%c37] : memref<98xf32, #tpu.memory_space<smem>>
    %c0_131 = arith.constant 0 : index
    %c0_132 = arith.constant 0 : index
    %c82 = arith.constant 82 : index
    %216 = vector.load %arg5[%c0_131, %c0_132, %c82] : memref<1x1x358xf32, #tpu.memory_space<vmem>>, vector<1x1x256xf32>
    %217 = vector.broadcast %215 : f32 to vector<1x1x256xf32>
    %218 = arith.mulf %217, %216 : vector<1x1x256xf32>
    %219 = arith.addf %209, %218 : vector<1x1x256xf32>
    %c86 = arith.constant 86 : index
    %220 = memref.load %arg1[%c86] : memref<98xf32, #tpu.memory_space<smem>>
    %c0_133 = arith.constant 0 : index
    %c0_134 = arith.constant 0 : index
    %c82_135 = arith.constant 82 : index
    %221 = vector.load %arg6[%c0_133, %c0_134, %c82_135] : memref<1x1x358xf32, #tpu.memory_space<vmem>>, vector<1x1x256xf32>
    %222 = vector.broadcast %220 : f32 to vector<1x1x256xf32>
    %223 = arith.mulf %222, %221 : vector<1x1x256xf32>
    %224 = arith.addf %214, %223 : vector<1x1x256xf32>
    %c44 = arith.constant 44 : index
    %225 = memref.load %arg1[%c44] : memref<98xf32, #tpu.memory_space<smem>>
    %c0_136 = arith.constant 0 : index
    %c0_137 = arith.constant 0 : index
    %c98 = arith.constant 98 : index
    %226 = vector.load %arg5[%c0_136, %c0_137, %c98] : memref<1x1x358xf32, #tpu.memory_space<vmem>>, vector<1x1x256xf32>
    %227 = vector.broadcast %225 : f32 to vector<1x1x256xf32>
    %228 = arith.mulf %227, %226 : vector<1x1x256xf32>
    %229 = arith.addf %219, %228 : vector<1x1x256xf32>
    %c93 = arith.constant 93 : index
    %230 = memref.load %arg1[%c93] : memref<98xf32, #tpu.memory_space<smem>>
    %c0_138 = arith.constant 0 : index
    %c0_139 = arith.constant 0 : index
    %c98_140 = arith.constant 98 : index
    %231 = vector.load %arg6[%c0_138, %c0_139, %c98_140] : memref<1x1x358xf32, #tpu.memory_space<vmem>>, vector<1x1x256xf32>
    %232 = vector.broadcast %230 : f32 to vector<1x1x256xf32>
    %233 = arith.mulf %232, %231 : vector<1x1x256xf32>
    %234 = arith.addf %224, %233 : vector<1x1x256xf32>
    %235 = arith.addf %229, %234 : vector<1x1x256xf32>
    %c2_141 = arith.constant 2 : index
    %c0_142 = arith.constant 0 : index
    %236 = vector.load %arg2[%c2_141, %c0_142] : memref<7x256xf32, #tpu.memory_space<vmem>>, vector<1x256xf32>
    %237 = vector.shape_cast %236 : vector<1x256xf32> to vector<1x1x256xf32>
    %238 = arith.mulf %235, %237 : vector<1x1x256xf32>
    %cst_143 = arith.constant 0.000000e+00 : f32
    %239 = vector.broadcast %cst_143 : f32 to vector<1x1x256xf32>
    %cst_144 = arith.constant 0.000000e+00 : f32
    %240 = vector.broadcast %cst_144 : f32 to vector<1x1x256xf32>
    %c3 = arith.constant 3 : index
    %241 = memref.load %arg1[%c3] : memref<98xf32, #tpu.memory_space<smem>>
    %c0_145 = arith.constant 0 : index
    %c0_146 = arith.constant 0 : index
    %c3_147 = arith.constant 3 : index
    %242 = vector.load %arg5[%c0_145, %c0_146, %c3_147] : memref<1x1x358xf32, #tpu.memory_space<vmem>>, vector<1x1x256xf32>
    %243 = vector.broadcast %241 : f32 to vector<1x1x256xf32>
    %244 = arith.mulf %243, %242 : vector<1x1x256xf32>
    %245 = arith.addf %239, %244 : vector<1x1x256xf32>
    %c52 = arith.constant 52 : index
    %246 = memref.load %arg1[%c52] : memref<98xf32, #tpu.memory_space<smem>>
    %c0_148 = arith.constant 0 : index
    %c0_149 = arith.constant 0 : index
    %c3_150 = arith.constant 3 : index
    %247 = vector.load %arg6[%c0_148, %c0_149, %c3_150] : memref<1x1x358xf32, #tpu.memory_space<vmem>>, vector<1x1x256xf32>
    %248 = vector.broadcast %246 : f32 to vector<1x1x256xf32>
    %249 = arith.mulf %248, %247 : vector<1x1x256xf32>
    %250 = arith.addf %240, %249 : vector<1x1x256xf32>
    %c10 = arith.constant 10 : index
    %251 = memref.load %arg1[%c10] : memref<98xf32, #tpu.memory_space<smem>>
    %c0_151 = arith.constant 0 : index
    %c0_152 = arith.constant 0 : index
    %c19 = arith.constant 19 : index
    %252 = vector.load %arg5[%c0_151, %c0_152, %c19] : memref<1x1x358xf32, #tpu.memory_space<vmem>>, vector<1x1x256xf32>
    %253 = vector.broadcast %251 : f32 to vector<1x1x256xf32>
    %254 = arith.mulf %253, %252 : vector<1x1x256xf32>
    %255 = arith.addf %245, %254 : vector<1x1x256xf32>
    %c59 = arith.constant 59 : index
    %256 = memref.load %arg1[%c59] : memref<98xf32, #tpu.memory_space<smem>>
    %c0_153 = arith.constant 0 : index
    %c0_154 = arith.constant 0 : index
    %c19_155 = arith.constant 19 : index
    %257 = vector.load %arg6[%c0_153, %c0_154, %c19_155] : memref<1x1x358xf32, #tpu.memory_space<vmem>>, vector<1x1x256xf32>
    %258 = vector.broadcast %256 : f32 to vector<1x1x256xf32>
    %259 = arith.mulf %258, %257 : vector<1x1x256xf32>
    %260 = arith.addf %250, %259 : vector<1x1x256xf32>
    %c17_156 = arith.constant 17 : index
    %261 = memref.load %arg1[%c17_156] : memref<98xf32, #tpu.memory_space<smem>>
    %c0_157 = arith.constant 0 : index
    %c0_158 = arith.constant 0 : index
    %c35_159 = arith.constant 35 : index
    %262 = vector.load %arg5[%c0_157, %c0_158, %c35_159] : memref<1x1x358xf32, #tpu.memory_space<vmem>>, vector<1x1x256xf32>
    %263 = vector.broadcast %261 : f32 to vector<1x1x256xf32>
    %264 = arith.mulf %263, %262 : vector<1x1x256xf32>
    %265 = arith.addf %255, %264 : vector<1x1x256xf32>
    %c66_160 = arith.constant 66 : index
    %266 = memref.load %arg1[%c66_160] : memref<98xf32, #tpu.memory_space<smem>>
    %c0_161 = arith.constant 0 : index
    %c0_162 = arith.constant 0 : index
    %c35_163 = arith.constant 35 : index
    %267 = vector.load %arg6[%c0_161, %c0_162, %c35_163] : memref<1x1x358xf32, #tpu.memory_space<vmem>>, vector<1x1x256xf32>
    %268 = vector.broadcast %266 : f32 to vector<1x1x256xf32>
    %269 = arith.mulf %268, %267 : vector<1x1x256xf32>
    %270 = arith.addf %260, %269 : vector<1x1x256xf32>
    %c24 = arith.constant 24 : index
    %271 = memref.load %arg1[%c24] : memref<98xf32, #tpu.memory_space<smem>>
    %c0_164 = arith.constant 0 : index
    %c0_165 = arith.constant 0 : index
    %c51_166 = arith.constant 51 : index
    %272 = vector.load %arg5[%c0_164, %c0_165, %c51_166] : memref<1x1x358xf32, #tpu.memory_space<vmem>>, vector<1x1x256xf32>
    %273 = vector.broadcast %271 : f32 to vector<1x1x256xf32>
    %274 = arith.mulf %273, %272 : vector<1x1x256xf32>
    %275 = arith.addf %265, %274 : vector<1x1x256xf32>
    %c73 = arith.constant 73 : index
    %276 = memref.load %arg1[%c73] : memref<98xf32, #tpu.memory_space<smem>>
    %c0_167 = arith.constant 0 : index
    %c0_168 = arith.constant 0 : index
    %c51_169 = arith.constant 51 : index
    %277 = vector.load %arg6[%c0_167, %c0_168, %c51_169] : memref<1x1x358xf32, #tpu.memory_space<vmem>>, vector<1x1x256xf32>
    %278 = vector.broadcast %276 : f32 to vector<1x1x256xf32>
    %279 = arith.mulf %278, %277 : vector<1x1x256xf32>
    %280 = arith.addf %270, %279 : vector<1x1x256xf32>
    %c31 = arith.constant 31 : index
    %281 = memref.load %arg1[%c31] : memref<98xf32, #tpu.memory_space<smem>>
    %c0_170 = arith.constant 0 : index
    %c0_171 = arith.constant 0 : index
    %c67 = arith.constant 67 : index
    %282 = vector.load %arg5[%c0_170, %c0_171, %c67] : memref<1x1x358xf32, #tpu.memory_space<vmem>>, vector<1x1x256xf32>
    %283 = vector.broadcast %281 : f32 to vector<1x1x256xf32>
    %284 = arith.mulf %283, %282 : vector<1x1x256xf32>
    %285 = arith.addf %275, %284 : vector<1x1x256xf32>
    %c80_172 = arith.constant 80 : index
    %286 = memref.load %arg1[%c80_172] : memref<98xf32, #tpu.memory_space<smem>>
    %c0_173 = arith.constant 0 : index
    %c0_174 = arith.constant 0 : index
    %c67_175 = arith.constant 67 : index
    %287 = vector.load %arg6[%c0_173, %c0_174, %c67_175] : memref<1x1x358xf32, #tpu.memory_space<vmem>>, vector<1x1x256xf32>
    %288 = vector.broadcast %286 : f32 to vector<1x1x256xf32>
    %289 = arith.mulf %288, %287 : vector<1x1x256xf32>
    %290 = arith.addf %280, %289 : vector<1x1x256xf32>
    %c38 = arith.constant 38 : index
    %291 = memref.load %arg1[%c38] : memref<98xf32, #tpu.memory_space<smem>>
    %c0_176 = arith.constant 0 : index
    %c0_177 = arith.constant 0 : index
    %c83 = arith.constant 83 : index
    %292 = vector.load %arg5[%c0_176, %c0_177, %c83] : memref<1x1x358xf32, #tpu.memory_space<vmem>>, vector<1x1x256xf32>
    %293 = vector.broadcast %291 : f32 to vector<1x1x256xf32>
    %294 = arith.mulf %293, %292 : vector<1x1x256xf32>
    %295 = arith.addf %285, %294 : vector<1x1x256xf32>
    %c87 = arith.constant 87 : index
    %296 = memref.load %arg1[%c87] : memref<98xf32, #tpu.memory_space<smem>>
    %c0_178 = arith.constant 0 : index
    %c0_179 = arith.constant 0 : index
    %c83_180 = arith.constant 83 : index
    %297 = vector.load %arg6[%c0_178, %c0_179, %c83_180] : memref<1x1x358xf32, #tpu.memory_space<vmem>>, vector<1x1x256xf32>
    %298 = vector.broadcast %296 : f32 to vector<1x1x256xf32>
    %299 = arith.mulf %298, %297 : vector<1x1x256xf32>
    %300 = arith.addf %290, %299 : vector<1x1x256xf32>
    %c45 = arith.constant 45 : index
    %301 = memref.load %arg1[%c45] : memref<98xf32, #tpu.memory_space<smem>>
    %c0_181 = arith.constant 0 : index
    %c0_182 = arith.constant 0 : index
    %c99 = arith.constant 99 : index
    %302 = vector.load %arg5[%c0_181, %c0_182, %c99] : memref<1x1x358xf32, #tpu.memory_space<vmem>>, vector<1x1x256xf32>
    %303 = vector.broadcast %301 : f32 to vector<1x1x256xf32>
    %304 = arith.mulf %303, %302 : vector<1x1x256xf32>
    %305 = arith.addf %295, %304 : vector<1x1x256xf32>
    %c94 = arith.constant 94 : index
    %306 = memref.load %arg1[%c94] : memref<98xf32, #tpu.memory_space<smem>>
    %c0_183 = arith.constant 0 : index
    %c0_184 = arith.constant 0 : index
    %c99_185 = arith.constant 99 : index
    %307 = vector.load %arg6[%c0_183, %c0_184, %c99_185] : memref<1x1x358xf32, #tpu.memory_space<vmem>>, vector<1x1x256xf32>
    %308 = vector.broadcast %306 : f32 to vector<1x1x256xf32>
    %309 = arith.mulf %308, %307 : vector<1x1x256xf32>
    %310 = arith.addf %300, %309 : vector<1x1x256xf32>
    %311 = arith.addf %305, %310 : vector<1x1x256xf32>
    %cst_186 = arith.constant 0.000000e+00 : f32
    %312 = vector.broadcast %cst_186 : f32 to vector<1x1x256xf32>
    %cst_187 = arith.constant 0.000000e+00 : f32
    %313 = vector.broadcast %cst_187 : f32 to vector<1x1x256xf32>
    %c4 = arith.constant 4 : index
    %314 = memref.load %arg1[%c4] : memref<98xf32, #tpu.memory_space<smem>>
    %c0_188 = arith.constant 0 : index
    %c0_189 = arith.constant 0 : index
    %c4_190 = arith.constant 4 : index
    %315 = vector.load %arg5[%c0_188, %c0_189, %c4_190] : memref<1x1x358xf32, #tpu.memory_space<vmem>>, vector<1x1x256xf32>
    %316 = vector.broadcast %314 : f32 to vector<1x1x256xf32>
    %317 = arith.mulf %316, %315 : vector<1x1x256xf32>
    %318 = arith.addf %312, %317 : vector<1x1x256xf32>
    %c53 = arith.constant 53 : index
    %319 = memref.load %arg1[%c53] : memref<98xf32, #tpu.memory_space<smem>>
    %c0_191 = arith.constant 0 : index
    %c0_192 = arith.constant 0 : index
    %c4_193 = arith.constant 4 : index
    %320 = vector.load %arg6[%c0_191, %c0_192, %c4_193] : memref<1x1x358xf32, #tpu.memory_space<vmem>>, vector<1x1x256xf32>
    %321 = vector.broadcast %319 : f32 to vector<1x1x256xf32>
    %322 = arith.mulf %321, %320 : vector<1x1x256xf32>
    %323 = arith.addf %313, %322 : vector<1x1x256xf32>
    %c11 = arith.constant 11 : index
    %324 = memref.load %arg1[%c11] : memref<98xf32, #tpu.memory_space<smem>>
    %c0_194 = arith.constant 0 : index
    %c0_195 = arith.constant 0 : index
    %c20 = arith.constant 20 : index
    %325 = vector.load %arg5[%c0_194, %c0_195, %c20] : memref<1x1x358xf32, #tpu.memory_space<vmem>>, vector<1x1x256xf32>
    %326 = vector.broadcast %324 : f32 to vector<1x1x256xf32>
    %327 = arith.mulf %326, %325 : vector<1x1x256xf32>
    %328 = arith.addf %318, %327 : vector<1x1x256xf32>
    %c60 = arith.constant 60 : index
    %329 = memref.load %arg1[%c60] : memref<98xf32, #tpu.memory_space<smem>>
    %c0_196 = arith.constant 0 : index
    %c0_197 = arith.constant 0 : index
    %c20_198 = arith.constant 20 : index
    %330 = vector.load %arg6[%c0_196, %c0_197, %c20_198] : memref<1x1x358xf32, #tpu.memory_space<vmem>>, vector<1x1x256xf32>
    %331 = vector.broadcast %329 : f32 to vector<1x1x256xf32>
    %332 = arith.mulf %331, %330 : vector<1x1x256xf32>
    %333 = arith.addf %323, %332 : vector<1x1x256xf32>
    %c18_199 = arith.constant 18 : index
    %334 = memref.load %arg1[%c18_199] : memref<98xf32, #tpu.memory_space<smem>>
    %c0_200 = arith.constant 0 : index
    %c0_201 = arith.constant 0 : index
    %c36_202 = arith.constant 36 : index
    %335 = vector.load %arg5[%c0_200, %c0_201, %c36_202] : memref<1x1x358xf32, #tpu.memory_space<vmem>>, vector<1x1x256xf32>
    %336 = vector.broadcast %334 : f32 to vector<1x1x256xf32>
    %337 = arith.mulf %336, %335 : vector<1x1x256xf32>
    %338 = arith.addf %328, %337 : vector<1x1x256xf32>
    %c67_203 = arith.constant 67 : index
    %339 = memref.load %arg1[%c67_203] : memref<98xf32, #tpu.memory_space<smem>>
    %c0_204 = arith.constant 0 : index
    %c0_205 = arith.constant 0 : index
    %c36_206 = arith.constant 36 : index
    %340 = vector.load %arg6[%c0_204, %c0_205, %c36_206] : memref<1x1x358xf32, #tpu.memory_space<vmem>>, vector<1x1x256xf32>
    %341 = vector.broadcast %339 : f32 to vector<1x1x256xf32>
    %342 = arith.mulf %341, %340 : vector<1x1x256xf32>
    %343 = arith.addf %333, %342 : vector<1x1x256xf32>
    %c25 = arith.constant 25 : index
    %344 = memref.load %arg1[%c25] : memref<98xf32, #tpu.memory_space<smem>>
    %c0_207 = arith.constant 0 : index
    %c0_208 = arith.constant 0 : index
    %c52_209 = arith.constant 52 : index
    %345 = vector.load %arg5[%c0_207, %c0_208, %c52_209] : memref<1x1x358xf32, #tpu.memory_space<vmem>>, vector<1x1x256xf32>
    %346 = vector.broadcast %344 : f32 to vector<1x1x256xf32>
    %347 = arith.mulf %346, %345 : vector<1x1x256xf32>
    %348 = arith.addf %338, %347 : vector<1x1x256xf32>
    %c74 = arith.constant 74 : index
    %349 = memref.load %arg1[%c74] : memref<98xf32, #tpu.memory_space<smem>>
    %c0_210 = arith.constant 0 : index
    %c0_211 = arith.constant 0 : index
    %c52_212 = arith.constant 52 : index
    %350 = vector.load %arg6[%c0_210, %c0_211, %c52_212] : memref<1x1x358xf32, #tpu.memory_space<vmem>>, vector<1x1x256xf32>
    %351 = vector.broadcast %349 : f32 to vector<1x1x256xf32>
    %352 = arith.mulf %351, %350 : vector<1x1x256xf32>
    %353 = arith.addf %343, %352 : vector<1x1x256xf32>
    %c32_213 = arith.constant 32 : index
    %354 = memref.load %arg1[%c32_213] : memref<98xf32, #tpu.memory_space<smem>>
    %c0_214 = arith.constant 0 : index
    %c0_215 = arith.constant 0 : index
    %c68 = arith.constant 68 : index
    %355 = vector.load %arg5[%c0_214, %c0_215, %c68] : memref<1x1x358xf32, #tpu.memory_space<vmem>>, vector<1x1x256xf32>
    %356 = vector.broadcast %354 : f32 to vector<1x1x256xf32>
    %357 = arith.mulf %356, %355 : vector<1x1x256xf32>
    %358 = arith.addf %348, %357 : vector<1x1x256xf32>
    %c81_216 = arith.constant 81 : index
    %359 = memref.load %arg1[%c81_216] : memref<98xf32, #tpu.memory_space<smem>>
    %c0_217 = arith.constant 0 : index
    %c0_218 = arith.constant 0 : index
    %c68_219 = arith.constant 68 : index
    %360 = vector.load %arg6[%c0_217, %c0_218, %c68_219] : memref<1x1x358xf32, #tpu.memory_space<vmem>>, vector<1x1x256xf32>
    %361 = vector.broadcast %359 : f32 to vector<1x1x256xf32>
    %362 = arith.mulf %361, %360 : vector<1x1x256xf32>
    %363 = arith.addf %353, %362 : vector<1x1x256xf32>
    %c39 = arith.constant 39 : index
    %364 = memref.load %arg1[%c39] : memref<98xf32, #tpu.memory_space<smem>>
    %c0_220 = arith.constant 0 : index
    %c0_221 = arith.constant 0 : index
    %c84_222 = arith.constant 84 : index
    %365 = vector.load %arg5[%c0_220, %c0_221, %c84_222] : memref<1x1x358xf32, #tpu.memory_space<vmem>>, vector<1x1x256xf32>
    %366 = vector.broadcast %364 : f32 to vector<1x1x256xf32>
    %367 = arith.mulf %366, %365 : vector<1x1x256xf32>
    %368 = arith.addf %358, %367 : vector<1x1x256xf32>
    %c88 = arith.constant 88 : index
    %369 = memref.load %arg1[%c88] : memref<98xf32, #tpu.memory_space<smem>>
    %c0_223 = arith.constant 0 : index
    %c0_224 = arith.constant 0 : index
    %c84_225 = arith.constant 84 : index
    %370 = vector.load %arg6[%c0_223, %c0_224, %c84_225] : memref<1x1x358xf32, #tpu.memory_space<vmem>>, vector<1x1x256xf32>
    %371 = vector.broadcast %369 : f32 to vector<1x1x256xf32>
    %372 = arith.mulf %371, %370 : vector<1x1x256xf32>
    %373 = arith.addf %363, %372 : vector<1x1x256xf32>
    %c46 = arith.constant 46 : index
    %374 = memref.load %arg1[%c46] : memref<98xf32, #tpu.memory_space<smem>>
    %c0_226 = arith.constant 0 : index
    %c0_227 = arith.constant 0 : index
    %c100 = arith.constant 100 : index
    %375 = vector.load %arg5[%c0_226, %c0_227, %c100] : memref<1x1x358xf32, #tpu.memory_space<vmem>>, vector<1x1x256xf32>
    %376 = vector.broadcast %374 : f32 to vector<1x1x256xf32>
    %377 = arith.mulf %376, %375 : vector<1x1x256xf32>
    %378 = arith.addf %368, %377 : vector<1x1x256xf32>
    %c95 = arith.constant 95 : index
    %379 = memref.load %arg1[%c95] : memref<98xf32, #tpu.memory_space<smem>>
    %c0_228 = arith.constant 0 : index
    %c0_229 = arith.constant 0 : index
    %c100_230 = arith.constant 100 : index
    %380 = vector.load %arg6[%c0_228, %c0_229, %c100_230] : memref<1x1x358xf32, #tpu.memory_space<vmem>>, vector<1x1x256xf32>
    %381 = vector.broadcast %379 : f32 to vector<1x1x256xf32>
    %382 = arith.mulf %381, %380 : vector<1x1x256xf32>
    %383 = arith.addf %373, %382 : vector<1x1x256xf32>
    %384 = arith.addf %378, %383 : vector<1x1x256xf32>
    %c4_231 = arith.constant 4 : index
    %c0_232 = arith.constant 0 : index
    %385 = vector.load %arg2[%c4_231, %c0_232] : memref<7x256xf32, #tpu.memory_space<vmem>>, vector<1x256xf32>
    %386 = vector.shape_cast %385 : vector<1x256xf32> to vector<1x1x256xf32>
    %387 = arith.mulf %384, %386 : vector<1x1x256xf32>
    %cst_233 = arith.constant 0.000000e+00 : f32
    %388 = vector.broadcast %cst_233 : f32 to vector<1x1x256xf32>
    %cst_234 = arith.constant 0.000000e+00 : f32
    %389 = vector.broadcast %cst_234 : f32 to vector<1x1x256xf32>
    %c5 = arith.constant 5 : index
    %390 = memref.load %arg1[%c5] : memref<98xf32, #tpu.memory_space<smem>>
    %c0_235 = arith.constant 0 : index
    %c0_236 = arith.constant 0 : index
    %c5_237 = arith.constant 5 : index
    %391 = vector.load %arg5[%c0_235, %c0_236, %c5_237] : memref<1x1x358xf32, #tpu.memory_space<vmem>>, vector<1x1x256xf32>
    %392 = vector.broadcast %390 : f32 to vector<1x1x256xf32>
    %393 = arith.mulf %392, %391 : vector<1x1x256xf32>
    %394 = arith.addf %388, %393 : vector<1x1x256xf32>
    %c54 = arith.constant 54 : index
    %395 = memref.load %arg1[%c54] : memref<98xf32, #tpu.memory_space<smem>>
    %c0_238 = arith.constant 0 : index
    %c0_239 = arith.constant 0 : index
    %c5_240 = arith.constant 5 : index
    %396 = vector.load %arg6[%c0_238, %c0_239, %c5_240] : memref<1x1x358xf32, #tpu.memory_space<vmem>>, vector<1x1x256xf32>
    %397 = vector.broadcast %395 : f32 to vector<1x1x256xf32>
    %398 = arith.mulf %397, %396 : vector<1x1x256xf32>
    %399 = arith.addf %389, %398 : vector<1x1x256xf32>
    %c12 = arith.constant 12 : index
    %400 = memref.load %arg1[%c12] : memref<98xf32, #tpu.memory_space<smem>>
    %c0_241 = arith.constant 0 : index
    %c0_242 = arith.constant 0 : index
    %c21_243 = arith.constant 21 : index
    %401 = vector.load %arg5[%c0_241, %c0_242, %c21_243] : memref<1x1x358xf32, #tpu.memory_space<vmem>>, vector<1x1x256xf32>
    %402 = vector.broadcast %400 : f32 to vector<1x1x256xf32>
    %403 = arith.mulf %402, %401 : vector<1x1x256xf32>
    %404 = arith.addf %394, %403 : vector<1x1x256xf32>
    %c61 = arith.constant 61 : index
    %405 = memref.load %arg1[%c61] : memref<98xf32, #tpu.memory_space<smem>>
    %c0_244 = arith.constant 0 : index
    %c0_245 = arith.constant 0 : index
    %c21_246 = arith.constant 21 : index
    %406 = vector.load %arg6[%c0_244, %c0_245, %c21_246] : memref<1x1x358xf32, #tpu.memory_space<vmem>>, vector<1x1x256xf32>
    %407 = vector.broadcast %405 : f32 to vector<1x1x256xf32>
    %408 = arith.mulf %407, %406 : vector<1x1x256xf32>
    %409 = arith.addf %399, %408 : vector<1x1x256xf32>
    %c19_247 = arith.constant 19 : index
    %410 = memref.load %arg1[%c19_247] : memref<98xf32, #tpu.memory_space<smem>>
    %c0_248 = arith.constant 0 : index
    %c0_249 = arith.constant 0 : index
    %c37_250 = arith.constant 37 : index
    %411 = vector.load %arg5[%c0_248, %c0_249, %c37_250] : memref<1x1x358xf32, #tpu.memory_space<vmem>>, vector<1x1x256xf32>
    %412 = vector.broadcast %410 : f32 to vector<1x1x256xf32>
    %413 = arith.mulf %412, %411 : vector<1x1x256xf32>
    %414 = arith.addf %404, %413 : vector<1x1x256xf32>
    %c68_251 = arith.constant 68 : index
    %415 = memref.load %arg1[%c68_251] : memref<98xf32, #tpu.memory_space<smem>>
    %c0_252 = arith.constant 0 : index
    %c0_253 = arith.constant 0 : index
    %c37_254 = arith.constant 37 : index
    %416 = vector.load %arg6[%c0_252, %c0_253, %c37_254] : memref<1x1x358xf32, #tpu.memory_space<vmem>>, vector<1x1x256xf32>
    %417 = vector.broadcast %415 : f32 to vector<1x1x256xf32>
    %418 = arith.mulf %417, %416 : vector<1x1x256xf32>
    %419 = arith.addf %409, %418 : vector<1x1x256xf32>
    %c26 = arith.constant 26 : index
    %420 = memref.load %arg1[%c26] : memref<98xf32, #tpu.memory_space<smem>>
    %c0_255 = arith.constant 0 : index
    %c0_256 = arith.constant 0 : index
    %c53_257 = arith.constant 53 : index
    %421 = vector.load %arg5[%c0_255, %c0_256, %c53_257] : memref<1x1x358xf32, #tpu.memory_space<vmem>>, vector<1x1x256xf32>
    %422 = vector.broadcast %420 : f32 to vector<1x1x256xf32>
    %423 = arith.mulf %422, %421 : vector<1x1x256xf32>
    %424 = arith.addf %414, %423 : vector<1x1x256xf32>
    %c75 = arith.constant 75 : index
    %425 = memref.load %arg1[%c75] : memref<98xf32, #tpu.memory_space<smem>>
    %c0_258 = arith.constant 0 : index
    %c0_259 = arith.constant 0 : index
    %c53_260 = arith.constant 53 : index
    %426 = vector.load %arg6[%c0_258, %c0_259, %c53_260] : memref<1x1x358xf32, #tpu.memory_space<vmem>>, vector<1x1x256xf32>
    %427 = vector.broadcast %425 : f32 to vector<1x1x256xf32>
    %428 = arith.mulf %427, %426 : vector<1x1x256xf32>
    %429 = arith.addf %419, %428 : vector<1x1x256xf32>
    %c33_261 = arith.constant 33 : index
    %430 = memref.load %arg1[%c33_261] : memref<98xf32, #tpu.memory_space<smem>>
    %c0_262 = arith.constant 0 : index
    %c0_263 = arith.constant 0 : index
    %c69 = arith.constant 69 : index
    %431 = vector.load %arg5[%c0_262, %c0_263, %c69] : memref<1x1x358xf32, #tpu.memory_space<vmem>>, vector<1x1x256xf32>
    %432 = vector.broadcast %430 : f32 to vector<1x1x256xf32>
    %433 = arith.mulf %432, %431 : vector<1x1x256xf32>
    %434 = arith.addf %424, %433 : vector<1x1x256xf32>
    %c82_264 = arith.constant 82 : index
    %435 = memref.load %arg1[%c82_264] : memref<98xf32, #tpu.memory_space<smem>>
    %c0_265 = arith.constant 0 : index
    %c0_266 = arith.constant 0 : index
    %c69_267 = arith.constant 69 : index
    %436 = vector.load %arg6[%c0_265, %c0_266, %c69_267] : memref<1x1x358xf32, #tpu.memory_space<vmem>>, vector<1x1x256xf32>
    %437 = vector.broadcast %435 : f32 to vector<1x1x256xf32>
    %438 = arith.mulf %437, %436 : vector<1x1x256xf32>
    %439 = arith.addf %429, %438 : vector<1x1x256xf32>
    %c40 = arith.constant 40 : index
    %440 = memref.load %arg1[%c40] : memref<98xf32, #tpu.memory_space<smem>>
    %c0_268 = arith.constant 0 : index
    %c0_269 = arith.constant 0 : index
    %c85_270 = arith.constant 85 : index
    %441 = vector.load %arg5[%c0_268, %c0_269, %c85_270] : memref<1x1x358xf32, #tpu.memory_space<vmem>>, vector<1x1x256xf32>
    %442 = vector.broadcast %440 : f32 to vector<1x1x256xf32>
    %443 = arith.mulf %442, %441 : vector<1x1x256xf32>
    %444 = arith.addf %434, %443 : vector<1x1x256xf32>
    %c89 = arith.constant 89 : index
    %445 = memref.load %arg1[%c89] : memref<98xf32, #tpu.memory_space<smem>>
    %c0_271 = arith.constant 0 : index
    %c0_272 = arith.constant 0 : index
    %c85_273 = arith.constant 85 : index
    %446 = vector.load %arg6[%c0_271, %c0_272, %c85_273] : memref<1x1x358xf32, #tpu.memory_space<vmem>>, vector<1x1x256xf32>
    %447 = vector.broadcast %445 : f32 to vector<1x1x256xf32>
    %448 = arith.mulf %447, %446 : vector<1x1x256xf32>
    %449 = arith.addf %439, %448 : vector<1x1x256xf32>
    %c47 = arith.constant 47 : index
    %450 = memref.load %arg1[%c47] : memref<98xf32, #tpu.memory_space<smem>>
    %c0_274 = arith.constant 0 : index
    %c0_275 = arith.constant 0 : index
    %c101 = arith.constant 101 : index
    %451 = vector.load %arg5[%c0_274, %c0_275, %c101] : memref<1x1x358xf32, #tpu.memory_space<vmem>>, vector<1x1x256xf32>
    %452 = vector.broadcast %450 : f32 to vector<1x1x256xf32>
    %453 = arith.mulf %452, %451 : vector<1x1x256xf32>
    %454 = arith.addf %444, %453 : vector<1x1x256xf32>
    %c96_276 = arith.constant 96 : index
    %455 = memref.load %arg1[%c96_276] : memref<98xf32, #tpu.memory_space<smem>>
    %c0_277 = arith.constant 0 : index
    %c0_278 = arith.constant 0 : index
    %c101_279 = arith.constant 101 : index
    %456 = vector.load %arg6[%c0_277, %c0_278, %c101_279] : memref<1x1x358xf32, #tpu.memory_space<vmem>>, vector<1x1x256xf32>
    %457 = vector.broadcast %455 : f32 to vector<1x1x256xf32>
    %458 = arith.mulf %457, %456 : vector<1x1x256xf32>
    %459 = arith.addf %449, %458 : vector<1x1x256xf32>
    %460 = arith.addf %454, %459 : vector<1x1x256xf32>
    %c5_280 = arith.constant 5 : index
    %c0_281 = arith.constant 0 : index
    %461 = vector.load %arg2[%c5_280, %c0_281] : memref<7x256xf32, #tpu.memory_space<vmem>>, vector<1x256xf32>
    %462 = vector.shape_cast %461 : vector<1x256xf32> to vector<1x1x256xf32>
    %463 = arith.mulf %460, %462 : vector<1x1x256xf32>
    %cst_282 = arith.constant 0.000000e+00 : f32
    %464 = vector.broadcast %cst_282 : f32 to vector<1x1x256xf32>
    %cst_283 = arith.constant 0.000000e+00 : f32
    %465 = vector.broadcast %cst_283 : f32 to vector<1x1x256xf32>
    %c6 = arith.constant 6 : index
    %466 = memref.load %arg1[%c6] : memref<98xf32, #tpu.memory_space<smem>>
    %c0_284 = arith.constant 0 : index
    %c0_285 = arith.constant 0 : index
    %c6_286 = arith.constant 6 : index
    %467 = vector.load %arg5[%c0_284, %c0_285, %c6_286] : memref<1x1x358xf32, #tpu.memory_space<vmem>>, vector<1x1x256xf32>
    %468 = vector.broadcast %466 : f32 to vector<1x1x256xf32>
    %469 = arith.mulf %468, %467 : vector<1x1x256xf32>
    %470 = arith.addf %464, %469 : vector<1x1x256xf32>
    %c55 = arith.constant 55 : index
    %471 = memref.load %arg1[%c55] : memref<98xf32, #tpu.memory_space<smem>>
    %c0_287 = arith.constant 0 : index
    %c0_288 = arith.constant 0 : index
    %c6_289 = arith.constant 6 : index
    %472 = vector.load %arg6[%c0_287, %c0_288, %c6_289] : memref<1x1x358xf32, #tpu.memory_space<vmem>>, vector<1x1x256xf32>
    %473 = vector.broadcast %471 : f32 to vector<1x1x256xf32>
    %474 = arith.mulf %473, %472 : vector<1x1x256xf32>
    %475 = arith.addf %465, %474 : vector<1x1x256xf32>
    %c13 = arith.constant 13 : index
    %476 = memref.load %arg1[%c13] : memref<98xf32, #tpu.memory_space<smem>>
    %c0_290 = arith.constant 0 : index
    %c0_291 = arith.constant 0 : index
    %c22_292 = arith.constant 22 : index
    %477 = vector.load %arg5[%c0_290, %c0_291, %c22_292] : memref<1x1x358xf32, #tpu.memory_space<vmem>>, vector<1x1x256xf32>
    %478 = vector.broadcast %476 : f32 to vector<1x1x256xf32>
    %479 = arith.mulf %478, %477 : vector<1x1x256xf32>
    %480 = arith.addf %470, %479 : vector<1x1x256xf32>
    %c62 = arith.constant 62 : index
    %481 = memref.load %arg1[%c62] : memref<98xf32, #tpu.memory_space<smem>>
    %c0_293 = arith.constant 0 : index
    %c0_294 = arith.constant 0 : index
    %c22_295 = arith.constant 22 : index
    %482 = vector.load %arg6[%c0_293, %c0_294, %c22_295] : memref<1x1x358xf32, #tpu.memory_space<vmem>>, vector<1x1x256xf32>
    %483 = vector.broadcast %481 : f32 to vector<1x1x256xf32>
    %484 = arith.mulf %483, %482 : vector<1x1x256xf32>
    %485 = arith.addf %475, %484 : vector<1x1x256xf32>
    %c20_296 = arith.constant 20 : index
    %486 = memref.load %arg1[%c20_296] : memref<98xf32, #tpu.memory_space<smem>>
    %c0_297 = arith.constant 0 : index
    %c0_298 = arith.constant 0 : index
    %c38_299 = arith.constant 38 : index
    %487 = vector.load %arg5[%c0_297, %c0_298, %c38_299] : memref<1x1x358xf32, #tpu.memory_space<vmem>>, vector<1x1x256xf32>
    %488 = vector.broadcast %486 : f32 to vector<1x1x256xf32>
    %489 = arith.mulf %488, %487 : vector<1x1x256xf32>
    %490 = arith.addf %480, %489 : vector<1x1x256xf32>
    %c69_300 = arith.constant 69 : index
    %491 = memref.load %arg1[%c69_300] : memref<98xf32, #tpu.memory_space<smem>>
    %c0_301 = arith.constant 0 : index
    %c0_302 = arith.constant 0 : index
    %c38_303 = arith.constant 38 : index
    %492 = vector.load %arg6[%c0_301, %c0_302, %c38_303] : memref<1x1x358xf32, #tpu.memory_space<vmem>>, vector<1x1x256xf32>
    %493 = vector.broadcast %491 : f32 to vector<1x1x256xf32>
    %494 = arith.mulf %493, %492 : vector<1x1x256xf32>
    %495 = arith.addf %485, %494 : vector<1x1x256xf32>
    %c27 = arith.constant 27 : index
    %496 = memref.load %arg1[%c27] : memref<98xf32, #tpu.memory_space<smem>>
    %c0_304 = arith.constant 0 : index
    %c0_305 = arith.constant 0 : index
    %c54_306 = arith.constant 54 : index
    %497 = vector.load %arg5[%c0_304, %c0_305, %c54_306] : memref<1x1x358xf32, #tpu.memory_space<vmem>>, vector<1x1x256xf32>
    %498 = vector.broadcast %496 : f32 to vector<1x1x256xf32>
    %499 = arith.mulf %498, %497 : vector<1x1x256xf32>
    %500 = arith.addf %490, %499 : vector<1x1x256xf32>
    %c76 = arith.constant 76 : index
    %501 = memref.load %arg1[%c76] : memref<98xf32, #tpu.memory_space<smem>>
    %c0_307 = arith.constant 0 : index
    %c0_308 = arith.constant 0 : index
    %c54_309 = arith.constant 54 : index
    %502 = vector.load %arg6[%c0_307, %c0_308, %c54_309] : memref<1x1x358xf32, #tpu.memory_space<vmem>>, vector<1x1x256xf32>
    %503 = vector.broadcast %501 : f32 to vector<1x1x256xf32>
    %504 = arith.mulf %503, %502 : vector<1x1x256xf32>
    %505 = arith.addf %495, %504 : vector<1x1x256xf32>
    %c34_310 = arith.constant 34 : index
    %506 = memref.load %arg1[%c34_310] : memref<98xf32, #tpu.memory_space<smem>>
    %c0_311 = arith.constant 0 : index
    %c0_312 = arith.constant 0 : index
    %c70_313 = arith.constant 70 : index
    %507 = vector.load %arg5[%c0_311, %c0_312, %c70_313] : memref<1x1x358xf32, #tpu.memory_space<vmem>>, vector<1x1x256xf32>
    %508 = vector.broadcast %506 : f32 to vector<1x1x256xf32>
    %509 = arith.mulf %508, %507 : vector<1x1x256xf32>
    %510 = arith.addf %500, %509 : vector<1x1x256xf32>
    %c83_314 = arith.constant 83 : index
    %511 = memref.load %arg1[%c83_314] : memref<98xf32, #tpu.memory_space<smem>>
    %c0_315 = arith.constant 0 : index
    %c0_316 = arith.constant 0 : index
    %c70_317 = arith.constant 70 : index
    %512 = vector.load %arg6[%c0_315, %c0_316, %c70_317] : memref<1x1x358xf32, #tpu.memory_space<vmem>>, vector<1x1x256xf32>
    %513 = vector.broadcast %511 : f32 to vector<1x1x256xf32>
    %514 = arith.mulf %513, %512 : vector<1x1x256xf32>
    %515 = arith.addf %505, %514 : vector<1x1x256xf32>
    %c41 = arith.constant 41 : index
    %516 = memref.load %arg1[%c41] : memref<98xf32, #tpu.memory_space<smem>>
    %c0_318 = arith.constant 0 : index
    %c0_319 = arith.constant 0 : index
    %c86_320 = arith.constant 86 : index
    %517 = vector.load %arg5[%c0_318, %c0_319, %c86_320] : memref<1x1x358xf32, #tpu.memory_space<vmem>>, vector<1x1x256xf32>
    %518 = vector.broadcast %516 : f32 to vector<1x1x256xf32>
    %519 = arith.mulf %518, %517 : vector<1x1x256xf32>
    %520 = arith.addf %510, %519 : vector<1x1x256xf32>
    %c90 = arith.constant 90 : index
    %521 = memref.load %arg1[%c90] : memref<98xf32, #tpu.memory_space<smem>>
    %c0_321 = arith.constant 0 : index
    %c0_322 = arith.constant 0 : index
    %c86_323 = arith.constant 86 : index
    %522 = vector.load %arg6[%c0_321, %c0_322, %c86_323] : memref<1x1x358xf32, #tpu.memory_space<vmem>>, vector<1x1x256xf32>
    %523 = vector.broadcast %521 : f32 to vector<1x1x256xf32>
    %524 = arith.mulf %523, %522 : vector<1x1x256xf32>
    %525 = arith.addf %515, %524 : vector<1x1x256xf32>
    %c48_324 = arith.constant 48 : index
    %526 = memref.load %arg1[%c48_324] : memref<98xf32, #tpu.memory_space<smem>>
    %c0_325 = arith.constant 0 : index
    %c0_326 = arith.constant 0 : index
    %c102 = arith.constant 102 : index
    %527 = vector.load %arg5[%c0_325, %c0_326, %c102] : memref<1x1x358xf32, #tpu.memory_space<vmem>>, vector<1x1x256xf32>
    %528 = vector.broadcast %526 : f32 to vector<1x1x256xf32>
    %529 = arith.mulf %528, %527 : vector<1x1x256xf32>
    %530 = arith.addf %520, %529 : vector<1x1x256xf32>
    %c97_327 = arith.constant 97 : index
    %531 = memref.load %arg1[%c97_327] : memref<98xf32, #tpu.memory_space<smem>>
    %c0_328 = arith.constant 0 : index
    %c0_329 = arith.constant 0 : index
    %c102_330 = arith.constant 102 : index
    %532 = vector.load %arg6[%c0_328, %c0_329, %c102_330] : memref<1x1x358xf32, #tpu.memory_space<vmem>>, vector<1x1x256xf32>
    %533 = vector.broadcast %531 : f32 to vector<1x1x256xf32>
    %534 = arith.mulf %533, %532 : vector<1x1x256xf32>
    %535 = arith.addf %525, %534 : vector<1x1x256xf32>
    %536 = arith.addf %530, %535 : vector<1x1x256xf32>
    %c6_331 = arith.constant 6 : index
    %c0_332 = arith.constant 0 : index
    %537 = vector.load %arg2[%c6_331, %c0_332] : memref<7x256xf32, #tpu.memory_space<vmem>>, vector<1x256xf32>
    %538 = vector.shape_cast %537 : vector<1x256xf32> to vector<1x1x256xf32>
    %539 = arith.mulf %536, %538 : vector<1x1x256xf32>
    %540 = arith.addf %86, %162 : vector<1x1x256xf32>
    %541 = arith.addf %238, %311 : vector<1x1x256xf32>
    %542 = arith.addf %540, %541 : vector<1x1x256xf32>
    %543 = arith.addf %387, %463 : vector<1x1x256xf32>
    %544 = arith.addf %543, %539 : vector<1x1x256xf32>
    %545 = arith.addf %542, %544 : vector<1x1x256xf32>
    %546 = arith.negf %545 : vector<1x1x256xf32>
    %547 = math.exp %546 : vector<1x1x256xf32>
    %cst_333 = arith.constant 1.000000e+00 : f32
    %548 = vector.broadcast %cst_333 : f32 to vector<1x1x256xf32>
    %549 = arith.addf %548, %547 : vector<1x1x256xf32>
    %550 = arith.divf %548, %549 : vector<1x1x256xf32>
    %c0_334 = arith.constant 0 : index
    %c0_335 = arith.constant 0 : index
    %c0_336 = arith.constant 0 : index
    %551 = vector.load %arg3[%c0_334, %c0_335, %c0_336] : memref<1x4x256xf32, #tpu.memory_space<vmem>>, vector<1x4x256xf32>
    %552 = vector.broadcast %550 : vector<1x1x256xf32> to vector<1x4x256xf32>
    %553 = arith.mulf %551, %552 : vector<1x4x256xf32>
    %c0_337 = arith.constant 0 : index
    %c0_338 = arith.constant 0 : index
    %c0_339 = arith.constant 0 : index
    %554 = vector.load %arg4[%c0_337, %c0_338, %c0_339] : memref<1x4x256xf32, #tpu.memory_space<vmem>>, vector<1x4x256xf32>
    tpu.vector_store %arg4[%c0_337, %c0_338, %c0_339], %553 {strides = array<i32>} : memref<1x4x256xf32, #tpu.memory_space<vmem>>, vector<1x4x256xf32>,
    return
  }
  func.func @transform_0(%arg0: i32) -> i32 {
    %c0_i32 = arith.constant 0 : i32
    %c0_i32_0 = arith.constant 0 : i32
    return %c0_i32 : i32
  }
  func.func @transform_1(%arg0: i32) -> (i32, i32) {
    %c0_i32 = arith.constant 0 : i32
    %c0_i32_0 = arith.constant 0 : i32
    %c0_i32_1 = arith.constant 0 : i32
    return %c0_i32, %c0_i32_0 : i32, i32
  }
  func.func @transform_2(%arg0: i32) -> (i32, i32, i32) {
    %c0_i32 = arith.constant 0 : i32
    %c0_i32_0 = arith.constant 0 : i32
    %c0_i32_1 = arith.constant 0 : i32
    return %arg0, %c0_i32, %c0_i32_0 : i32, i32, i32
  }
  func.func @transform_3(%arg0: i32) -> (i32, i32, i32) {
    %c0_i32 = arith.constant 0 : i32
    %c0_i32_0 = arith.constant 0 : i32
    %c0_i32_1 = arith.constant 0 : i32
    return %arg0, %c0_i32, %c0_i32_0 : i32, i32, i32
  }
}

</mosaic_0001>

<llo_original>
// kernel: tpu_custom_call.1
$region0: #{tpu_custom_call.1}
  #allocation0 [shape = 'u32[]', space=smem, size = 0x4, offset = 0x4, fixed_abs, tag = 'smem constant byte address 0x4 - core index']
  #allocation1 [shape = 'u32[72,128]{1,0:T(1,128)}', space=vmem, size = 0x9000, scoped, tag = 'internal scratch']
  #allocation2 [shape = 'f32[1,1,358]{2,1,0:T(1,128)}', space=vmem, size = 0x600, scoped, tag = 'scratch operand']
  #allocation3 [shape = 'f32[1,1,358]{2,1,0:T(1,128)}', space=vmem, size = 0x600, scoped, tag = 'scratch operand']
  %s0 = inlined_call_operand.hbm [shape: f32[98], index: 0, kind: input, shape index: {}]
  %s1 = inlined_call_operand.hbm [shape: f32[7,256], index: 1, kind: input, shape index: {}]
  %s2 = inlined_call_operand.hbm [shape: f32[2,4,256], index: 2, kind: input, shape index: {}]
  %s3 = inlined_call_operand.hbm [shape: f32[2,4,256], index: 3, kind: output, shape index: {}]
  %s4 = sld [smem:[#allocation0]]
  $region57: #{tpu_custom_call.1} parent=0
    _
  %s6 = ssub.s32 1, %s4
  %s7 = scalar_select 0, %s6, %s4
  $region1: #{tpu_custom_call.1} parent=0
    #allocation4 [shape = 'u8[512]{0}', space=smem, size = 0x200, scoped, tag = 'input window, operand 0, single buffered']
    #allocation5 [shape = 's32[2]{0}', space=sflag, size = 0x8, scoped, tag = 'scoped memory for tpu_custom_call.1']
    #allocation6 [shape = 's32[2]{0}', space=sflag, size = 0x8, scoped, tag = 'scoped memory for tpu_custom_call.1']
    #allocation7 [shape = 's32[2]{0}', space=sflag, size = 0x8, scoped, tag = 'scoped memory for tpu_custom_call.1']
    #allocation8 [shape = 'u8[8192]{0}', space=vmem, size = 0x2000, scoped, tag = 'input window, operand 1, single buffered']
    #allocation9 [shape = 'u8[8192]{0}', space=vmem, size = 0x2000, scoped, tag = 'input window, operand 2']
    #allocation10 [shape = 's32[2]{0}', space=sflag, size = 0x8, scoped, tag = 'scoped memory for tpu_custom_call.1']
    #allocation11 [shape = 'u8[8192]{0}', space=vmem, size = 0x2000, scoped, tag = 'output window, operand 0']
    %8 = vsyncpa [#allocation7], 0
    %9 = vsyncpa [#allocation5], 0
    %10 = vsyncpa [#allocation10], 0
    %s11 = scalar_lea.sflag [#allocation10], 1
    %12 = vsyncpa %s11, 0
    %13 = vsyncpa [#allocation6], 0
    %s14 = scalar_lea.sflag [#allocation6], 1
    %15 = vsyncpa %s14, 0
    loop: start=0, step=1, limit=4
    $region2: #{tpu_custom_call.1} parent=1 // loop_pre_header
      _
    $region3: #{tpu_custom_call.1} parent=1 // loop_header
      %s17 = sphi 0, %s21
      %p18 = scmp.ge.s32.totalorder %s17, 4
      %s25 = sphi 0, %s25
      %s27 = sphi 0, %s25
      %s28 = sphi 0, %s27
      %s42 = sphi 0, %s28
      %s46 = sphi 0, %s46
      %s48 = sphi 0, %s46
      %s49 = sphi 0, %s48
      %s63 = sphi 0, %s49
      %s69 = sphi 0, %s71
      %s72 = sphi 0, %s69
      %s73 = sphi 0, %s72
      %s89 = sphi 0, %s73
      %s95 = sphi 0, %s97
      %s98 = sphi 0, %s95
      %s99 = sphi 0, %s98
      %s115 = sphi 0, %s99
    $region4: #{tpu_custom_call.1} parent=1 // loop_header_branch
      %20 = sbr.rel (%p18) target = $region8
    $region5: #{tpu_custom_call.1} parent=1 // loop_body
      %s22 = ssub.s32 %s17, 1
      %s23 = ssub.s32 %s17, 2
      %s24 = sadd.s32 %s17, 1
      %s26 = sadd.s32 %s25, 1
      %p29 = scmp.eq.s32.totalorder %s17, 1
      %p30 = scmp.ne.s32.totalorder %s25, %s27
      %p31 = scmp.eq.s32.totalorder %s17, 0
      %p32 = por %p30, %p31
      %p33 = scmp.ne.s32.totalorder %s25, %s27
      %p34 = scmp.eq.s32.totalorder %s22, 1
      %p35 = por %p33, %p34
      %p36 = scmp.ne.s32.totalorder %s27, %s28
      %p37 = scmp.eq.s32.totalorder %s22, 0
      %p38 = por %p36, %p37
      %p39 = scmp.ne.s32.totalorder %s27, %s28
      %p40 = scmp.eq.s32.totalorder %s23, 1
      %p41 = por %p39, %p40
      %p43 = scmp.ne.s32.totalorder %s28, %s42
      %p44 = scmp.eq.s32.totalorder %s23, 0
      %p45 = por %p43, %p44
      %s47 = sadd.s32 %s46, 1
      %p50 = scmp.eq.s32.totalorder %s17, 1
      %p51 = scmp.ne.s32.totalorder %s46, %s48
      %p52 = scmp.eq.s32.totalorder %s17, 0
      %p53 = por %p51, %p52
      %p54 = scmp.ne.s32.totalorder %s46, %s48
      %p55 = scmp.eq.s32.totalorder %s22, 1
      %p56 = por %p54, %p55
      %p57 = scmp.ne.s32.totalorder %s48, %s49
      %p58 = scmp.eq.s32.totalorder %s22, 0
      %p59 = por %p57, %p58
      %p60 = scmp.ne.s32.totalorder %s48, %s49
      %p61 = scmp.eq.s32.totalorder %s23, 1
      %p62 = por %p60, %p61
      %p64 = scmp.ne.s32.totalorder %s49, %s63
      %p65 = scmp.eq.s32.totalorder %s23, 0
      %p66 = por %p64, %p65
      %s67 = ssub.s32 %s17, %s24
      %p68 = scmp.eq.s32.totalorder %s67, 0
      %s70 = sadd.s32 %s69, 1
      %s71 = scalar_select %p68, %s69, %s70
      %p74 = pneg %p68
      %p75 = scmp.eq.s32.totalorder %s17, 1
      %p76 = por %p74, %p75
      %p77 = scmp.ne.s32.totalorder %s69, %s72
      %p78 = scmp.eq.s32.totalorder %s17, 0
      %p79 = por %p77, %p78
      %p80 = scmp.ne.s32.totalorder %s69, %s72
      %p81 = scmp.eq.s32.totalorder %s22, 1
      %p82 = por %p80, %p81
      %p83 = scmp.ne.s32.totalorder %s72, %s73
      %p84 = scmp.eq.s32.totalorder %s22, 0
      %p85 = por %p83, %p84
      %p86 = scmp.ne.s32.totalorder %s72, %s73
      %p87 = scmp.eq.s32.totalorder %s23, 1
      %p88 = por %p86, %p87
      %p90 = scmp.ne.s32.totalorder %s73, %s89
      %p91 = scmp.eq.s32.totalorder %s23, 0
      %p92 = por %p90, %p91
      %s93 = ssub.s32 %s17, %s24
      %p94 = scmp.eq.s32.totalorder %s93, 0
      %s96 = sadd.s32 %s95, 1
      %s97 = scalar_select %p94, %s95, %s96
      %p100 = pneg %p94
      %p101 = scmp.eq.s32.totalorder %s17, 1
      %p102 = por %p100, %p101
      %p103 = scmp.ne.s32.totalorder %s95, %s98
      %p104 = scmp.eq.s32.totalorder %s17, 0
      %p105 = por %p103, %p104
      %p106 = scmp.ne.s32.totalorder %s95, %s98
      %p107 = scmp.eq.s32.totalorder %s22, 1
      %p108 = por %p106, %p107
      %p109 = scmp.ne.s32.totalorder %s98, %s99
      %p110 = scmp.eq.s32.totalorder %s22, 0
      %p111 = por %p109, %p110
      %p112 = scmp.ne.s32.totalorder %s98, %s99
      %p113 = scmp.eq.s32.totalorder %s23, 1
      %p114 = por %p112, %p113
      %p116 = scmp.ne.s32.totalorder %s99, %s115
      %p117 = scmp.eq.s32.totalorder %s23, 0
      %p118 = por %p116, %p117
      %p119 = scmp.le.s32.totalorder 1, %s17
      %p120 = scmp.lt.s32.totalorder %s17, 3
      %p121 = pnand %p119, %p120
      %p122 = pneg %p121
      // Predicated region
      $region9: #{tpu_custom_call.1} parent=5 // pred_check
        _
      $region10: #{tpu_custom_call.1} parent=5 // pred_check_branch
        %124 = sbr.rel (%p121) target = $region12
      $region11: #{tpu_custom_call.1} parent=5 // pred_region
        %s125 = ssub.s32 %s17, 1
        // Predicated region
        $region13: #{tpu_custom_call.1} parent=11 // pred_check
          %p126 = pneg %p38
        $region14: #{tpu_custom_call.1} parent=11 // pred_check_branch
          %128 = sbr.rel (%p126) target = $region16
        $region15: #{tpu_custom_call.1} parent=11 // pred_region
          %130 = vsyncadd [#allocation7], 0
          %s132 = sshll.u32 %s0, 4
          %s133 = int_to_ptr.hbm [resolvable:$true] %s132
          %135 = dma.hbm_to_smem %s133, 16, [#allocation4], [#allocation7]
        $region16: #{tpu_custom_call.1} parent=11 // pred_fallthru
          _
        // Predicated region
        $region17: #{tpu_custom_call.1} parent=11 // pred_check
          %p136 = pneg %p59
        $region18: #{tpu_custom_call.1} parent=11 // pred_check_branch
          %138 = sbr.rel (%p136) target = $region20
        $region19: #{tpu_custom_call.1} parent=11 // pred_region
          %140 = vsyncadd [#allocation5], 0
          %s142 = sshll.u32 %s1, 4
          %s143 = int_to_ptr.hbm [resolvable:$true] %s142
          %s144 = sshll.u32 [#allocation8], 4
          %s145 = int_to_ptr.vmem [resolvable:$true] %s144
          %147 = dma.hbm_to_vmem [thread:$0]  %s143, 256, %s145, [#allocation5]
        $region20: #{tpu_custom_call.1} parent=11 // pred_fallthru
          _
      $region12: #{tpu_custom_call.1} parent=5 // pred_fallthru
        _
      %p148 = scmp.lt.s32.totalorder %s17, 2
      // Predicated region
      $region21: #{tpu_custom_call.1} parent=5 // pred_check
        %p149 = pneg %p148
      $region22: #{tpu_custom_call.1} parent=5 // pred_check_branch
        %151 = sbr.rel (%p149) target = $region24
      $region23: #{tpu_custom_call.1} parent=5 // pred_region
        // Predicated region
        $region25: #{tpu_custom_call.1} parent=23 // pred_check
          %p152 = pneg %p79
        $region26: #{tpu_custom_call.1} parent=23 // pred_check_branch
          %154 = sbr.rel (%p152) target = $region28
        $region27: #{tpu_custom_call.1} parent=23 // pred_region
          %s155 = sand.u32 %s69, 1
          %s156 = scalar_lea.sflag [#allocation10], %s155
          %s157 = sand.u32 %s69, 1
          %s158 = smul.addr %s157, 8
          %s159 = scalar_lea.vmem [#allocation9], %s158
          %161 = vsyncadd %s156, 0
          %s162 = smul.addr %s17, 2
          %s163 = smul.addr %s162, 4
          %s164 = scalar_lea.hbm %s2, %s163
          %s166 = sshll.u32 %s164, 4
          %s167 = int_to_ptr.hbm [resolvable:$true] %s166
          %s168 = sshll.u32 %s159, 4
          %s169 = int_to_ptr.vmem [resolvable:$true] %s168
          %171 = dma.hbm_to_vmem [thread:$0]  %s167, 128, %s169, %s156
        $region28: #{tpu_custom_call.1} parent=23 // pred_fallthru
          _
      $region24: #{tpu_custom_call.1} parent=5 // pred_fallthru
        _
      %p172 = scmp.le.s32.totalorder 1, %s17
      %p173 = scmp.lt.s32.totalorder %s17, 3
      %p174 = pnand %p172, %p173
      %p175 = pneg %p174
      // Predicated region
      $region29: #{tpu_custom_call.1} parent=5 // pred_check
        _
      $region30: #{tpu_custom_call.1} parent=5 // pred_check_branch
        %177 = sbr.rel (%p174) target = $region32
      $region31: #{tpu_custom_call.1} parent=5 // pred_region
        %s178 = ssub.s32 %s17, 1
        // Predicated region
        $region33: #{tpu_custom_call.1} parent=31 // pred_check
          %p179 = pneg %p38
        $region34: #{tpu_custom_call.1} parent=31 // pred_check_branch
          %181 = sbr.rel (%p179) target = $region36
        $region35: #{tpu_custom_call.1} parent=31 // pred_region
          %183 = dma.done [#allocation7], 16
        $region36: #{tpu_custom_call.1} parent=31 // pred_fallthru
          _
        // Predicated region
        $region37: #{tpu_custom_call.1} parent=31 // pred_check
          %p184 = pneg %p59
        $region38: #{tpu_custom_call.1} parent=31 // pred_check_branch
          %186 = sbr.rel (%p184) target = $region40
        $region39: #{tpu_custom_call.1} parent=31 // pred_region
          %188 = dma.done [#allocation5], 256
        $region40: #{tpu_custom_call.1} parent=31 // pred_fallthru
          _
        %s189 = sand.u32 %s72, 1
        %s190 = scalar_lea.sflag [#allocation10], %s189
        %s191 = sand.u32 %s72, 1
        %s192 = smul.addr %s191, 8
        %s193 = scalar_lea.vmem [#allocation9], %s192
        // Predicated region
        $region41: #{tpu_custom_call.1} parent=31 // pred_check
          %p194 = pneg %p85
        $region42: #{tpu_custom_call.1} parent=31 // pred_check_branch
          %196 = sbr.rel (%p194) target = $region44
        $region43: #{tpu_custom_call.1} parent=31 // pred_region
          %198 = dma.done %s190, 128
        $region44: #{tpu_custom_call.1} parent=31 // pred_fallthru
          _
        %199 = sfence
        %p200 = pneg %p38
        %p201 = pneg %p35
        %p202 = pneg %p59
        %p203 = pneg %p56
        %s204 = sand.u32 %s72, 1
        %s205 = scalar_lea.sflag [#allocation10], %s204
        %s206 = sand.u32 %s72, 1
        %s207 = smul.addr %s206, 8
        %s208 = scalar_lea.vmem [#allocation9], %s207
        %p209 = pneg %p85
        %p210 = pneg %p82
        %p211 = pneg %p111
        %p212 = pneg %p108
        %s213 = sand.u32 %s98, 1
        %s214 = scalar_lea.sflag [#allocation6], %s213
        %s215 = sand.u32 %s98, 1
        %s216 = smul.addr %s215, 8
        %s217 = scalar_lea.vmem [#allocation11], %s216
        %v218 = vld [vmem:[%s193] sm:$0xff]
        %220 = vst [vmem:[#allocation1] ss:$2 sm:$0xff] %v218
        %v221 = vld.sshfl [vmem:[#allocation1] sm:$0xff pattern:$0x75316420]
        %v222 = vld.sshfl [vmem:[#allocation1 + $0x8] sm:$0xff pattern:$0x75316420]
        %vm225 = vcmask 1043456
        %v226 = vsel %vm225, %v221, 0.0
        %v227 = vrot.slane %v226, 4
        %v228 = vadd.f32 %v226, %v227
        %v229 = vrot.slane %v228, 2
        %v230 = vadd.f32 %v228, %v229
        %v231 = vrot.slane %v230, 1
        %v232 = vadd.f32 %v230, %v231
        %v233 = vsel %vm225, %v222, 0.0
        %v234 = vrot.slane %v233, 4
        %v235 = vadd.f32 %v233, %v234
        %v236 = vrot.slane %v235, 2
        %v237 = vadd.f32 %v235, %v236
        %v238 = vrot.slane %v237, 1
        %v239 = vadd.f32 %v237, %v238
        %240 = vst [vmem:[#allocation1] ss:$2 sm:$0xff] %v218
        %v241 = vld.sshfl [vmem:[#allocation1] sm:$0xff pattern:$0x75316420]
        %v242 = vld.sshfl [vmem:[#allocation1 + $0x8] sm:$0xff pattern:$0x75316420]
        %v245 = vsel %vm225, %v241, -inf
        %v246 = vrot.slane %v245, 4
        %v247 = vmax.f32 %v245, %v246
        %v248 = vrot.slane %v247, 2
        %v249 = vmax.f32 %v247, %v248
        %v250 = vrot.slane %v249, 1
        %v251 = vmax.f32 %v249, %v250
        %v252 = vsel %vm225, %v242, -inf
        %v253 = vrot.slane %v252, 4
        %v254 = vmax.f32 %v252, %v253
        %v255 = vrot.slane %v254, 2
        %v256 = vmax.f32 %v254, %v255
        %v257 = vrot.slane %v256, 1
        %v258 = vmax.f32 %v256, %v257
        %v259 = vlaneseq
        %vm260 = vcmp.ge.s32.totalorder %v259, 0
        %vm261 = vcmp.lt.s32.totalorder %v259, 358
        %vm262 = vmand %vm260, %vm261
        %263 = vst.msk [vmem:[#allocation2] sm:$0x7] %vm262, 0.0
        %264 = vst.msk [vmem:[#allocation3] sm:$0x7] %vm262, 0.0
        %v267 = vrot.slane %v239, 7
        %vm268 = vcmask 1040384
        %v269 = vsel %vm268, %v232, %v267
        %270 = vrot.lane.b32.xlu0 %v269, 51
        %v271 = vpop.permute.xlu0 %270
        %v272 = vrot.slane %v271, 7
        %vm273 = vcmask 416768
        %v274 = vsel %vm273, %v272, %v271
        %vm276 = vcmp.ge.s32.totalorder %v259, 51
        %vm277 = vcmp.lt.s32.totalorder %v259, 307
        %vm278 = vmand %vm276, %vm277
        %279 = vst.msk [vmem:[#allocation2] sm:$0x7] %vm278, %v274
        %v282 = vrot.slane %v258, 7
        %v283 = vsel %vm268, %v251, %v282
        %284 = vrot.lane.b32.xlu0 %v283, 51
        %v285 = vpop.permute.xlu0 %284
        %v286 = vrot.slane %v285, 7
        %v287 = vsel %vm273, %v286, %v285
        %289 = vst.msk [vmem:[#allocation3] sm:$0x7] %vm278, %v287
        %s290 = sld [smem:[#allocation4]]
        %v291 = vld [vmem:[#allocation2] sm:$0x3]
        %v292 = vstv %s290
        %v293 = vmul.f32 %v292, %v291
        %v294 = vadd.f32 %v293, 0.0
        %s295 = sld [smem:[#allocation4 + $0x31]]
        %v296 = vld [vmem:[#allocation3] sm:$0x3]
        %v297 = vstv %s295
        %v298 = vmul.f32 %v297, %v296
        %v299 = vadd.f32 %v298, 0.0
        %s300 = sld [smem:[#allocation4 + $0x7]]
        %v301 = vld [vmem:[#allocation2] sm:$0x7]
        %v302 = vstv %s300
        %v303 = vmul.f32 %v302, %v301
        %305 = vrot.lane.b32.xlu0 %v303, 112
        %v306 = vpop.permute.xlu0 %305
        %v307 = vrot.slane %v306, 1
        %vm308 = vcmask 916480
        %v309 = vsel %vm308, %v306, %v307
        %v311 = vadd.f32 %v294, %v309
        %s312 = sld [smem:[#allocation4 + $0x38]]
        %v313 = vld [vmem:[#allocation3] sm:$0x7]
        %v314 = vstv %s312
        %v315 = vmul.f32 %v314, %v313
        %317 = vrot.lane.b32.xlu0 %v315, 112
        %v318 = vpop.permute.xlu0 %317
        %v319 = vrot.slane %v318, 1
        %v320 = vsel %vm308, %v318, %v319
        %v322 = vadd.f32 %v299, %v320
        %s323 = sld [smem:[#allocation4 + $0xe]]
        %v324 = vstv %s323
        %v325 = vmul.f32 %v324, %v301
        %327 = vrot.lane.b32.xlu0 %v325, 96
        %v328 = vpop.permute.xlu0 %327
        %v329 = vrot.slane %v328, 1
        %vm330 = vcmask 785408
        %v331 = vsel %vm330, %v328, %v329
        %v333 = vadd.f32 %v311, %v331
        %s334 = sld [smem:[#allocation4 + $0x3f]]
        %v335 = vstv %s334
        %v336 = vmul.f32 %v335, %v313
        %338 = vrot.lane.b32.xlu0 %v336, 96
        %v339 = vpop.permute.xlu0 %338
        %v340 = vrot.slane %v339, 1
        %v341 = vsel %vm330, %v339, %v340
        %v343 = vadd.f32 %v322, %v341
        %s344 = sld [smem:[#allocation4 + $0x15]]
        %v345 = vstv %s344
        %v346 = vmul.f32 %v345, %v301
        %348 = vrot.lane.b32.xlu0 %v346, 80
        %v349 = vpop.permute.xlu0 %348
        %v350 = vrot.slane %v349, 1
        %vm351 = vcmask 654336
        %v352 = vsel %vm351, %v349, %v350
        %v354 = vadd.f32 %v333, %v352
        %s355 = sld [smem:[#allocation4 + $0x46]]
        %v356 = vstv %s355
        %v357 = vmul.f32 %v356, %v313
        %359 = vrot.lane.b32.xlu0 %v357, 80
        %v360 = vpop.permute.xlu0 %359
        %v361 = vrot.slane %v360, 1
        %v362 = vsel %vm351, %v360, %v361
        %v364 = vadd.f32 %v343, %v362
        %s365 = sld [smem:[#allocation4 + $0x1c]]
        %v366 = vstv %s365
        %v367 = vmul.f32 %v366, %v301
        %369 = vrot.lane.b32.xlu0 %v367, 64
        %v370 = vpop.permute.xlu0 %369
        %v371 = vrot.slane %v370, 1
        %vm372 = vcmask 523264
        %v373 = vsel %vm372, %v370, %v371
        %v375 = vadd.f32 %v354, %v373
        %s376 = sld [smem:[#allocation4 + $0x4d]]
        %v377 = vstv %s376
        %v378 = vmul.f32 %v377, %v313
        %380 = vrot.lane.b32.xlu0 %v378, 64
        %v381 = vpop.permute.xlu0 %380
        %v382 = vrot.slane %v381, 1
        %v383 = vsel %vm372, %v381, %v382
        %v385 = vadd.f32 %v364, %v383
        %s386 = sld [smem:[#allocation4 + $0x23]]
        %v387 = vstv %s386
        %v388 = vmul.f32 %v387, %v301
        %390 = vrot.lane.b32.xlu0 %v388, 48
        %v391 = vpop.permute.xlu0 %390
        %v392 = vrot.slane %v391, 1
        %vm393 = vcmask 392192
        %v394 = vsel %vm393, %v391, %v392
        %v396 = vadd.f32 %v375, %v394
        %s397 = sld [smem:[#allocation4 + $0x54]]
        %v398 = vstv %s397
        %v399 = vmul.f32 %v398, %v313
        %401 = vrot.lane.b32.xlu0 %v399, 48
        %v402 = vpop.permute.xlu0 %401
        %v403 = vrot.slane %v402, 1
        %v404 = vsel %vm393, %v402, %v403
        %v406 = vadd.f32 %v385, %v404
        %s407 = sld [smem:[#allocation4 + $0x2a]]
        %v408 = vstv %s407
        %v409 = vmul.f32 %v408, %v301
        %411 = vrot.lane.b32.xlu0 %v409, 32
        %v412 = vpop.permute.xlu0 %411
        %v413 = vrot.slane %v412, 1
        %vm414 = vcmask 261120
        %v415 = vsel %vm414, %v412, %v413
        %v417 = vadd.f32 %v396, %v415
        %s418 = sld [smem:[#allocation4 + $0x5b]]
        %v419 = vstv %s418
        %v420 = vmul.f32 %v419, %v313
        %422 = vrot.lane.b32.xlu0 %v420, 32
        %v423 = vpop.permute.xlu0 %422
        %v424 = vrot.slane %v423, 1
        %v425 = vsel %vm414, %v423, %v424
        %v427 = vadd.f32 %v406, %v425
        %v428 = vadd.f32 %v417, %v427
        %v429 = vld [vmem:[#allocation8] ss:$8 sm:$0x3]
        %v430 = vmul.f32 %v428, %v429
        %s431 = sld [smem:[#allocation4 + $0x1]]
        %v432 = vstv %s431
        %v433 = vmul.f32 %v432, %v301
        %v434 = vadd.f32 %v433, 0.0
        %s435 = sld [smem:[#allocation4 + $0x32]]
        %v436 = vstv %s435
        %v437 = vmul.f32 %v436, %v313
        %v438 = vadd.f32 %v437, 0.0
        %s439 = sld [smem:[#allocation4 + $0x8]]
        %v440 = vstv %s439
        %v441 = vmul.f32 %v440, %v301
        %443 = vrot.lane.b32.xlu0 %v441, 112
        %v444 = vpop.permute.xlu0 %443
        %v445 = vrot.slane %v444, 1
        %v446 = vsel %vm308, %v444, %v445
        %v448 = vadd.f32 %v434, %v446
        %s449 = sld [smem:[#allocation4 + $0x39]]
        %v450 = vstv %s449
        %v451 = vmul.f32 %v450, %v313
        %453 = vrot.lane.b32.xlu0 %v451, 112
        %v454 = vpop.permute.xlu0 %453
        %v455 = vrot.slane %v454, 1
        %v456 = vsel %vm308, %v454, %v455
        %v458 = vadd.f32 %v438, %v456
        %s459 = sld [smem:[#allocation4 + $0xf]]
        %v460 = vstv %s459
        %v461 = vmul.f32 %v460, %v301
        %463 = vrot.lane.b32.xlu0 %v461, 96
        %v464 = vpop.permute.xlu0 %463
        %v465 = vrot.slane %v464, 1
        %v466 = vsel %vm330, %v464, %v465
        %v468 = vadd.f32 %v448, %v466
        %s469 = sld [smem:[#allocation4 + $0x40]]
        %v470 = vstv %s469
        %v471 = vmul.f32 %v470, %v313
        %473 = vrot.lane.b32.xlu0 %v471, 96
        %v474 = vpop.permute.xlu0 %473
        %v475 = vrot.slane %v474, 1
        %v476 = vsel %vm330, %v474, %v475
        %v478 = vadd.f32 %v458, %v476
        %s479 = sld [smem:[#allocation4 + $0x16]]
        %v480 = vstv %s479
        %v481 = vmul.f32 %v480, %v301
        %483 = vrot.lane.b32.xlu0 %v481, 80
        %v484 = vpop.permute.xlu0 %483
        %v485 = vrot.slane %v484, 1
        %v486 = vsel %vm351, %v484, %v485
        %v488 = vadd.f32 %v468, %v486
        %s489 = sld [smem:[#allocation4 + $0x47]]
        %v490 = vstv %s489
        %v491 = vmul.f32 %v490, %v313
        %493 = vrot.lane.b32.xlu0 %v491, 80
        %v494 = vpop.permute.xlu0 %493
        %v495 = vrot.slane %v494, 1
        %v496 = vsel %vm351, %v494, %v495
        %v498 = vadd.f32 %v478, %v496
        %s499 = sld [smem:[#allocation4 + $0x1d]]
        %v500 = vstv %s499
        %v501 = vmul.f32 %v500, %v301
        %503 = vrot.lane.b32.xlu0 %v501, 64
        %v504 = vpop.permute.xlu0 %503
        %v505 = vrot.slane %v504, 1
        %v506 = vsel %vm372, %v504, %v505
        %v508 = vadd.f32 %v488, %v506
        %s509 = sld [smem:[#allocation4 + $0x4e]]
        %v510 = vstv %s509
        %v511 = vmul.f32 %v510, %v313
        %513 = vrot.lane.b32.xlu0 %v511, 64
        %v514 = vpop.permute.xlu0 %513
        %v515 = vrot.slane %v514, 1
        %v516 = vsel %vm372, %v514, %v515
        %v518 = vadd.f32 %v498, %v516
        %s519 = sld [smem:[#allocation4 + $0x24]]
        %v520 = vstv %s519
        %v521 = vmul.f32 %v520, %v301
        %523 = vrot.lane.b32.xlu0 %v521, 48
        %v524 = vpop.permute.xlu0 %523
        %v525 = vrot.slane %v524, 1
        %v526 = vsel %vm393, %v524, %v525
        %v528 = vadd.f32 %v508, %v526
        %s529 = sld [smem:[#allocation4 + $0x55]]
        %v530 = vstv %s529
        %v531 = vmul.f32 %v530, %v313
        %533 = vrot.lane.b32.xlu0 %v531, 48
        %v534 = vpop.permute.xlu0 %533
        %v535 = vrot.slane %v534, 1
        %v536 = vsel %vm393, %v534, %v535
        %v538 = vadd.f32 %v518, %v536
        %s539 = sld [smem:[#allocation4 + $0x2b]]
        %v540 = vstv %s539
        %v541 = vmul.f32 %v540, %v301
        %543 = vrot.lane.b32.xlu0 %v541, 32
        %v544 = vpop.permute.xlu0 %543
        %v545 = vrot.slane %v544, 1
        %v546 = vsel %vm414, %v544, %v545
        %v548 = vadd.f32 %v528, %v546
        %s549 = sld [smem:[#allocation4 + $0x5c]]
        %v550 = vstv %s549
        %v551 = vmul.f32 %v550, %v313
        %553 = vrot.lane.b32.xlu0 %v551, 32
        %v554 = vpop.permute.xlu0 %553
        %v555 = vrot.slane %v554, 1
        %v556 = vsel %vm414, %v554, %v555
        %v558 = vadd.f32 %v538, %v556
        %v559 = vadd.f32 %v548, %v558
        %s560 = scalar_lea.vmem [#allocation8], 1
        %v561 = vld [vmem:[%s560] ss:$8 sm:$0x3]
        %563 = vrot.lane.b32.xlu0 %v561, 1
        %v564 = vpop.permute.xlu0 %563
        %v565 = vrot.slane %v564, 7
        %vm566 = vcmask 7168
        %v567 = vsel %vm566, %v565, %v564
        %v569 = vmul.f32 %v559, %v567
        %s570 = sld [smem:[#allocation4 + $0x2]]
        %v571 = vstv %s570
        %v572 = vmul.f32 %v571, %v301
        %v573 = vadd.f32 %v572, 0.0
        %s574 = sld [smem:[#allocation4 + $0x33]]
        %v575 = vstv %s574
        %v576 = vmul.f32 %v575, %v313
        %v577 = vadd.f32 %v576, 0.0
        %s578 = sld [smem:[#allocation4 + $0x9]]
        %v579 = vstv %s578
        %v580 = vmul.f32 %v579, %v301
        %582 = vrot.lane.b32.xlu0 %v580, 112
        %v583 = vpop.permute.xlu0 %582
        %v584 = vrot.slane %v583, 1
        %v585 = vsel %vm308, %v583, %v584
        %v587 = vadd.f32 %v573, %v585
        %s588 = sld [smem:[#allocation4 + $0x3a]]
        %v589 = vstv %s588
        %v590 = vmul.f32 %v589, %v313
        %592 = vrot.lane.b32.xlu0 %v590, 112
        %v593 = vpop.permute.xlu0 %592
        %v594 = vrot.slane %v593, 1
        %v595 = vsel %vm308, %v593, %v594
        %v597 = vadd.f32 %v577, %v595
        %s598 = sld [smem:[#allocation4 + $0x10]]
        %v599 = vstv %s598
        %v600 = vmul.f32 %v599, %v301
        %602 = vrot.lane.b32.xlu0 %v600, 96
        %v603 = vpop.permute.xlu0 %602
        %v604 = vrot.slane %v603, 1
        %v605 = vsel %vm330, %v603, %v604
        %v607 = vadd.f32 %v587, %v605
        %s608 = sld [smem:[#allocation4 + $0x41]]
        %v609 = vstv %s608
        %v610 = vmul.f32 %v609, %v313
        %612 = vrot.lane.b32.xlu0 %v610, 96
        %v613 = vpop.permute.xlu0 %612
        %v614 = vrot.slane %v613, 1
        %v615 = vsel %vm330, %v613, %v614
        %v617 = vadd.f32 %v597, %v615
        %s618 = sld [smem:[#allocation4 + $0x17]]
        %v619 = vstv %s618
        %v620 = vmul.f32 %v619, %v301
        %622 = vrot.lane.b32.xlu0 %v620, 80
        %v623 = vpop.permute.xlu0 %622
        %v624 = vrot.slane %v623, 1
        %v625 = vsel %vm351, %v623, %v624
        %v627 = vadd.f32 %v607, %v625
        %s628 = sld [smem:[#allocation4 + $0x48]]
        %v629 = vstv %s628
        %v630 = vmul.f32 %v629, %v313
        %632 = vrot.lane.b32.xlu0 %v630, 80
        %v633 = vpop.permute.xlu0 %632
        %v634 = vrot.slane %v633, 1
        %v635 = vsel %vm351, %v633, %v634
        %v637 = vadd.f32 %v617, %v635
        %s638 = sld [smem:[#allocation4 + $0x1e]]
        %v639 = vstv %s638
        %v640 = vmul.f32 %v639, %v301
        %642 = vrot.lane.b32.xlu0 %v640, 64
        %v643 = vpop.permute.xlu0 %642
        %v644 = vrot.slane %v643, 1
        %v645 = vsel %vm372, %v643, %v644
        %v647 = vadd.f32 %v627, %v645
        %s648 = sld [smem:[#allocation4 + $0x4f]]
        %v649 = vstv %s648
        %v650 = vmul.f32 %v649, %v313
        %652 = vrot.lane.b32.xlu0 %v650, 64
        %v653 = vpop.permute.xlu0 %652
        %v654 = vrot.slane %v653, 1
        %v655 = vsel %vm372, %v653, %v654
        %v657 = vadd.f32 %v637, %v655
        %s658 = sld [smem:[#allocation4 + $0x25]]
        %v659 = vstv %s658
        %v660 = vmul.f32 %v659, %v301
        %662 = vrot.lane.b32.xlu0 %v660, 48
        %v663 = vpop.permute.xlu0 %662
        %v664 = vrot.slane %v663, 1
        %v665 = vsel %vm393, %v663, %v664
        %v667 = vadd.f32 %v647, %v665
        %s668 = sld [smem:[#allocation4 + $0x56]]
        %v669 = vstv %s668
        %v670 = vmul.f32 %v669, %v313
        %672 = vrot.lane.b32.xlu0 %v670, 48
        %v673 = vpop.permute.xlu0 %672
        %v674 = vrot.slane %v673, 1
        %v675 = vsel %vm393, %v673, %v674
        %v677 = vadd.f32 %v657, %v675
        %s678 = sld [smem:[#allocation4 + $0x2c]]
        %v679 = vstv %s678
        %v680 = vmul.f32 %v679, %v301
        %682 = vrot.lane.b32.xlu0 %v680, 32
        %v683 = vpop.permute.xlu0 %682
        %v684 = vrot.slane %v683, 1
        %v685 = vsel %vm414, %v683, %v684
        %v687 = vadd.f32 %v667, %v685
        %s688 = sld [smem:[#allocation4 + $0x5d]]
        %v689 = vstv %s688
        %v690 = vmul.f32 %v689, %v313
        %692 = vrot.lane.b32.xlu0 %v690, 32
        %v693 = vpop.permute.xlu0 %692
        %v694 = vrot.slane %v693, 1
        %v695 = vsel %vm414, %v693, %v694
        %v697 = vadd.f32 %v677, %v695
        %v698 = vadd.f32 %v687, %v697
        %s699 = scalar_lea.vmem [#allocation8], 2
        %v700 = vld [vmem:[%s699] ss:$8 sm:$0x3]
        %702 = vrot.lane.b32.xlu0 %v700, 2
        %v703 = vpop.permute.xlu0 %702
        %v704 = vrot.slane %v703, 7
        %vm705 = vcmask 15360
        %v706 = vsel %vm705, %v704, %v703
        %v708 = vmul.f32 %v698, %v706
        %s709 = sld [smem:[#allocation4 + $0x3]]
        %v710 = vstv %s709
        %v711 = vmul.f32 %v710, %v301
        %v712 = vadd.f32 %v711, 0.0
        %s713 = sld [smem:[#allocation4 + $0x34]]
        %v714 = vstv %s713
        %v715 = vmul.f32 %v714, %v313
        %v716 = vadd.f32 %v715, 0.0
        %s717 = sld [smem:[#allocation4 + $0xa]]
        %v718 = vstv %s717
        %v719 = vmul.f32 %v718, %v301
        %721 = vrot.lane.b32.xlu0 %v719, 112
        %v722 = vpop.permute.xlu0 %721
        %v723 = vrot.slane %v722, 1
        %v724 = vsel %vm308, %v722, %v723
        %v726 = vadd.f32 %v712, %v724
        %s727 = sld [smem:[#allocation4 + $0x3b]]
        %v728 = vstv %s727
        %v729 = vmul.f32 %v728, %v313
        %731 = vrot.lane.b32.xlu0 %v729, 112
        %v732 = vpop.permute.xlu0 %731
        %v733 = vrot.slane %v732, 1
        %v734 = vsel %vm308, %v732, %v733
        %v736 = vadd.f32 %v716, %v734
        %s737 = sld [smem:[#allocation4 + $0x11]]
        %v738 = vstv %s737
        %v739 = vmul.f32 %v738, %v301
        %741 = vrot.lane.b32.xlu0 %v739, 96
        %v742 = vpop.permute.xlu0 %741
        %v743 = vrot.slane %v742, 1
        %v744 = vsel %vm330, %v742, %v743
        %v746 = vadd.f32 %v726, %v744
        %s747 = sld [smem:[#allocation4 + $0x42]]
        %v748 = vstv %s747
        %v749 = vmul.f32 %v748, %v313
        %751 = vrot.lane.b32.xlu0 %v749, 96
        %v752 = vpop.permute.xlu0 %751
        %v753 = vrot.slane %v752, 1
        %v754 = vsel %vm330, %v752, %v753
        %v756 = vadd.f32 %v736, %v754
        %s757 = sld [smem:[#allocation4 + $0x18]]
        %v758 = vstv %s757
        %v759 = vmul.f32 %v758, %v301
        %761 = vrot.lane.b32.xlu0 %v759, 80
        %v762 = vpop.permute.xlu0 %761
        %v763 = vrot.slane %v762, 1
        %v764 = vsel %vm351, %v762, %v763
        %v766 = vadd.f32 %v746, %v764
        %s767 = sld [smem:[#allocation4 + $0x49]]
        %v768 = vstv %s767
        %v769 = vmul.f32 %v768, %v313
        %771 = vrot.lane.b32.xlu0 %v769, 80
        %v772 = vpop.permute.xlu0 %771
        %v773 = vrot.slane %v772, 1
        %v774 = vsel %vm351, %v772, %v773
        %v776 = vadd.f32 %v756, %v774
        %s777 = sld [smem:[#allocation4 + $0x1f]]
        %v778 = vstv %s777
        %v779 = vmul.f32 %v778, %v301
        %781 = vrot.lane.b32.xlu0 %v779, 64
        %v782 = vpop.permute.xlu0 %781
        %v783 = vrot.slane %v782, 1
        %v784 = vsel %vm372, %v782, %v783
        %v786 = vadd.f32 %v766, %v784
        %s787 = sld [smem:[#allocation4 + $0x50]]
        %v788 = vstv %s787
        %v789 = vmul.f32 %v788, %v313
        %791 = vrot.lane.b32.xlu0 %v789, 64
        %v792 = vpop.permute.xlu0 %791
        %v793 = vrot.slane %v792, 1
        %v794 = vsel %vm372, %v792, %v793
        %v796 = vadd.f32 %v776, %v794
        %s797 = sld [smem:[#allocation4 + $0x26]]
        %v798 = vstv %s797
        %v799 = vmul.f32 %v798, %v301
        %801 = vrot.lane.b32.xlu0 %v799, 48
        %v802 = vpop.permute.xlu0 %801
        %v803 = vrot.slane %v802, 1
        %v804 = vsel %vm393, %v802, %v803
        %v806 = vadd.f32 %v786, %v804
        %s807 = sld [smem:[#allocation4 + $0x57]]
        %v808 = vstv %s807
        %v809 = vmul.f32 %v808, %v313
        %811 = vrot.lane.b32.xlu0 %v809, 48
        %v812 = vpop.permute.xlu0 %811
        %v813 = vrot.slane %v812, 1
        %v814 = vsel %vm393, %v812, %v813
        %v816 = vadd.f32 %v796, %v814
        %s817 = sld [smem:[#allocation4 + $0x2d]]
        %v818 = vstv %s817
        %v819 = vmul.f32 %v818, %v301
        %821 = vrot.lane.b32.xlu0 %v819, 32
        %v822 = vpop.permute.xlu0 %821
        %v823 = vrot.slane %v822, 1
        %v824 = vsel %vm414, %v822, %v823
        %v826 = vadd.f32 %v806, %v824
        %s827 = sld [smem:[#allocation4 + $0x5e]]
        %v828 = vstv %s827
        %v829 = vmul.f32 %v828, %v313
        %831 = vrot.lane.b32.xlu0 %v829, 32
        %v832 = vpop.permute.xlu0 %831
        %v833 = vrot.slane %v832, 1
        %v834 = vsel %vm414, %v832, %v833
        %v836 = vadd.f32 %v816, %v834
        %v837 = vadd.f32 %v826, %v836
        %s838 = sld [smem:[#allocation4 + $0x4]]
        %v839 = vstv %s838
        %v840 = vmul.f32 %v839, %v301
        %v841 = vadd.f32 %v840, 0.0
        %s842 = sld [smem:[#allocation4 + $0x35]]
        %v843 = vstv %s842
        %v844 = vmul.f32 %v843, %v313
        %v845 = vadd.f32 %v844, 0.0
        %s846 = sld [smem:[#allocation4 + $0xb]]
        %v847 = vstv %s846
        %v848 = vmul.f32 %v847, %v301
        %850 = vrot.lane.b32.xlu0 %v848, 112
        %v851 = vpop.permute.xlu0 %850
        %v852 = vrot.slane %v851, 1
        %v853 = vsel %vm308, %v851, %v852
        %v855 = vadd.f32 %v841, %v853
        %s856 = sld [smem:[#allocation4 + $0x3c]]
        %v857 = vstv %s856
        %v858 = vmul.f32 %v857, %v313
        %860 = vrot.lane.b32.xlu0 %v858, 112
        %v861 = vpop.permute.xlu0 %860
        %v862 = vrot.slane %v861, 1
        %v863 = vsel %vm308, %v861, %v862
        %v865 = vadd.f32 %v845, %v863
        %s866 = sld [smem:[#allocation4 + $0x12]]
        %v867 = vstv %s866
        %v868 = vmul.f32 %v867, %v301
        %870 = vrot.lane.b32.xlu0 %v868, 96
        %v871 = vpop.permute.xlu0 %870
        %v872 = vrot.slane %v871, 1
        %v873 = vsel %vm330, %v871, %v872
        %v875 = vadd.f32 %v855, %v873
        %s876 = sld [smem:[#allocation4 + $0x43]]
        %v877 = vstv %s876
        %v878 = vmul.f32 %v877, %v313
        %880 = vrot.lane.b32.xlu0 %v878, 96
        %v881 = vpop.permute.xlu0 %880
        %v882 = vrot.slane %v881, 1
        %v883 = vsel %vm330, %v881, %v882
        %v885 = vadd.f32 %v865, %v883
        %s886 = sld [smem:[#allocation4 + $0x19]]
        %v887 = vstv %s886
        %v888 = vmul.f32 %v887, %v301
        %890 = vrot.lane.b32.xlu0 %v888, 80
        %v891 = vpop.permute.xlu0 %890
        %v892 = vrot.slane %v891, 1
        %v893 = vsel %vm351, %v891, %v892
        %v895 = vadd.f32 %v875, %v893
        %s896 = sld [smem:[#allocation4 + $0x4a]]
        %v897 = vstv %s896
        %v898 = vmul.f32 %v897, %v313
        %900 = vrot.lane.b32.xlu0 %v898, 80
        %v901 = vpop.permute.xlu0 %900
        %v902 = vrot.slane %v901, 1
        %v903 = vsel %vm351, %v901, %v902
        %v905 = vadd.f32 %v885, %v903
        %s906 = sld [smem:[#allocation4 + $0x20]]
        %v907 = vstv %s906
        %v908 = vmul.f32 %v907, %v301
        %910 = vrot.lane.b32.xlu0 %v908, 64
        %v911 = vpop.permute.xlu0 %910
        %v912 = vrot.slane %v911, 1
        %v913 = vsel %vm372, %v911, %v912
        %v915 = vadd.f32 %v895, %v913
        %s916 = sld [smem:[#allocation4 + $0x51]]
        %v917 = vstv %s916
        %v918 = vmul.f32 %v917, %v313
        %920 = vrot.lane.b32.xlu0 %v918, 64
        %v921 = vpop.permute.xlu0 %920
        %v922 = vrot.slane %v921, 1
        %v923 = vsel %vm372, %v921, %v922
        %v925 = vadd.f32 %v905, %v923
        %s926 = sld [smem:[#allocation4 + $0x27]]
        %v927 = vstv %s926
        %v928 = vmul.f32 %v927, %v301
        %930 = vrot.lane.b32.xlu0 %v928, 48
        %v931 = vpop.permute.xlu0 %930
        %v932 = vrot.slane %v931, 1
        %v933 = vsel %vm393, %v931, %v932
        %v935 = vadd.f32 %v915, %v933
        %s936 = sld [smem:[#allocation4 + $0x58]]
        %v937 = vstv %s936
        %v938 = vmul.f32 %v937, %v313
        %940 = vrot.lane.b32.xlu0 %v938, 48
        %v941 = vpop.permute.xlu0 %940
        %v942 = vrot.slane %v941, 1
        %v943 = vsel %vm393, %v941, %v942
        %v945 = vadd.f32 %v925, %v943
        %s946 = sld [smem:[#allocation4 + $0x2e]]
        %v947 = vstv %s946
        %v948 = vmul.f32 %v947, %v301
        %950 = vrot.lane.b32.xlu0 %v948, 32
        %v951 = vpop.permute.xlu0 %950
        %v952 = vrot.slane %v951, 1
        %v953 = vsel %vm414, %v951, %v952
        %v955 = vadd.f32 %v935, %v953
        %s956 = sld [smem:[#allocation4 + $0x5f]]
        %v957 = vstv %s956
        %v958 = vmul.f32 %v957, %v313
        %960 = vrot.lane.b32.xlu0 %v958, 32
        %v961 = vpop.permute.xlu0 %960
        %v962 = vrot.slane %v961, 1
        %v963 = vsel %vm414, %v961, %v962
        %v965 = vadd.f32 %v945, %v963
        %v966 = vadd.f32 %v955, %v965
        %s967 = scalar_lea.vmem [#allocation8], 4
        %v968 = vld [vmem:[%s967] ss:$8 sm:$0x3]
        %970 = vrot.lane.b32.xlu0 %v968, 4
        %v971 = vpop.permute.xlu0 %970
        %v972 = vrot.slane %v971, 7
        %vm973 = vcmask 31744
        %v974 = vsel %vm973, %v972, %v971
        %v976 = vmul.f32 %v966, %v974
        %s977 = sld [smem:[#allocation4 + $0x5]]
        %v978 = vstv %s977
        %v979 = vmul.f32 %v978, %v301
        %v980 = vadd.f32 %v979, 0.0
        %s981 = sld [smem:[#allocation4 + $0x36]]
        %v982 = vstv %s981
        %v983 = vmul.f32 %v982, %v313
        %v984 = vadd.f32 %v983, 0.0
        %s985 = sld [smem:[#allocation4 + $0xc]]
        %v986 = vstv %s985
        %v987 = vmul.f32 %v986, %v301
        %989 = vrot.lane.b32.xlu0 %v987, 112
        %v990 = vpop.permute.xlu0 %989
        %v991 = vrot.slane %v990, 1
        %v992 = vsel %vm308, %v990, %v991
        %v994 = vadd.f32 %v980, %v992
        %s995 = sld [smem:[#allocation4 + $0x3d]]
        %v996 = vstv %s995
        %v997 = vmul.f32 %v996, %v313
        %999 = vrot.lane.b32.xlu0 %v997, 112
        %v1000 = vpop.permute.xlu0 %999
        %v1001 = vrot.slane %v1000, 1
        %v1002 = vsel %vm308, %v1000, %v1001
        %v1004 = vadd.f32 %v984, %v1002
        %s1005 = sld [smem:[#allocation4 + $0x13]]
        %v1006 = vstv %s1005
        %v1007 = vmul.f32 %v1006, %v301
        %1009 = vrot.lane.b32.xlu0 %v1007, 96
        %v1010 = vpop.permute.xlu0 %1009
        %v1011 = vrot.slane %v1010, 1
        %v1012 = vsel %vm330, %v1010, %v1011
        %v1014 = vadd.f32 %v994, %v1012
        %s1015 = sld [smem:[#allocation4 + $0x44]]
        %v1016 = vstv %s1015
        %v1017 = vmul.f32 %v1016, %v313
        %1019 = vrot.lane.b32.xlu0 %v1017, 96
        %v1020 = vpop.permute.xlu0 %1019
        %v1021 = vrot.slane %v1020, 1
        %v1022 = vsel %vm330, %v1020, %v1021
        %v1024 = vadd.f32 %v1004, %v1022
        %s1025 = sld [smem:[#allocation4 + $0x1a]]
        %v1026 = vstv %s1025
        %v1027 = vmul.f32 %v1026, %v301
        %1029 = vrot.lane.b32.xlu0 %v1027, 80
        %v1030 = vpop.permute.xlu0 %1029
        %v1031 = vrot.slane %v1030, 1
        %v1032 = vsel %vm351, %v1030, %v1031
        %v1034 = vadd.f32 %v1014, %v1032
        %s1035 = sld [smem:[#allocation4 + $0x4b]]
        %v1036 = vstv %s1035
        %v1037 = vmul.f32 %v1036, %v313
        %1039 = vrot.lane.b32.xlu0 %v1037, 80
        %v1040 = vpop.permute.xlu0 %1039
        %v1041 = vrot.slane %v1040, 1
        %v1042 = vsel %vm351, %v1040, %v1041
        %v1044 = vadd.f32 %v1024, %v1042
        %s1045 = sld [smem:[#allocation4 + $0x21]]
        %v1046 = vstv %s1045
        %v1047 = vmul.f32 %v1046, %v301
        %1049 = vrot.lane.b32.xlu0 %v1047, 64
        %v1050 = vpop.permute.xlu0 %1049
        %v1051 = vrot.slane %v1050, 1
        %v1052 = vsel %vm372, %v1050, %v1051
        %v1054 = vadd.f32 %v1034, %v1052
        %s1055 = sld [smem:[#allocation4 + $0x52]]
        %v1056 = vstv %s1055
        %v1057 = vmul.f32 %v1056, %v313
        %1059 = vrot.lane.b32.xlu0 %v1057, 64
        %v1060 = vpop.permute.xlu0 %1059
        %v1061 = vrot.slane %v1060, 1
        %v1062 = vsel %vm372, %v1060, %v1061
        %v1064 = vadd.f32 %v1044, %v1062
        %s1065 = sld [smem:[#allocation4 + $0x28]]
        %v1066 = vstv %s1065
        %v1067 = vmul.f32 %v1066, %v301
        %1069 = vrot.lane.b32.xlu0 %v1067, 48
        %v1070 = vpop.permute.xlu0 %1069
        %v1071 = vrot.slane %v1070, 1
        %v1072 = vsel %vm393, %v1070, %v1071
        %v1074 = vadd.f32 %v1054, %v1072
        %s1075 = sld [smem:[#allocation4 + $0x59]]
        %v1076 = vstv %s1075
        %v1077 = vmul.f32 %v1076, %v313
        %1079 = vrot.lane.b32.xlu0 %v1077, 48
        %v1080 = vpop.permute.xlu0 %1079
        %v1081 = vrot.slane %v1080, 1
        %v1082 = vsel %vm393, %v1080, %v1081
        %v1084 = vadd.f32 %v1064, %v1082
        %s1085 = sld [smem:[#allocation4 + $0x2f]]
        %v1086 = vstv %s1085
        %v1087 = vmul.f32 %v1086, %v301
        %1089 = vrot.lane.b32.xlu0 %v1087, 32
        %v1090 = vpop.permute.xlu0 %1089
        %v1091 = vrot.slane %v1090, 1
        %v1092 = vsel %vm414, %v1090, %v1091
        %v1094 = vadd.f32 %v1074, %v1092
        %s1095 = sld [smem:[#allocation4 + $0x60]]
        %v1096 = vstv %s1095
        %v1097 = vmul.f32 %v1096, %v313
        %1099 = vrot.lane.b32.xlu0 %v1097, 32
        %v1100 = vpop.permute.xlu0 %1099
        %v1101 = vrot.slane %v1100, 1
        %v1102 = vsel %vm414, %v1100, %v1101
        %v1104 = vadd.f32 %v1084, %v1102
        %v1105 = vadd.f32 %v1094, %v1104
        %s1106 = scalar_lea.vmem [#allocation8], 5
        %v1107 = vld [vmem:[%s1106] ss:$8 sm:$0x3]
        %1109 = vrot.lane.b32.xlu0 %v1107, 5
        %v1110 = vpop.permute.xlu0 %1109
        %v1111 = vrot.slane %v1110, 7
        %vm1112 = vcmask 39936
        %v1113 = vsel %vm1112, %v1111, %v1110
        %v1115 = vmul.f32 %v1105, %v1113
        %s1116 = sld [smem:[#allocation4 + $0x6]]
        %v1117 = vstv %s1116
        %v1118 = vmul.f32 %v1117, %v301
        %v1119 = vadd.f32 %v1118, 0.0
        %s1120 = sld [smem:[#allocation4 + $0x37]]
        %v1121 = vstv %s1120
        %v1122 = vmul.f32 %v1121, %v313
        %v1123 = vadd.f32 %v1122, 0.0
        %s1124 = sld [smem:[#allocation4 + $0xd]]
        %v1125 = vstv %s1124
        %v1126 = vmul.f32 %v1125, %v301
        %1128 = vrot.lane.b32.xlu0 %v1126, 112
        %v1129 = vpop.permute.xlu0 %1128
        %v1130 = vrot.slane %v1129, 1
        %v1131 = vsel %vm308, %v1129, %v1130
        %v1133 = vadd.f32 %v1119, %v1131
        %s1134 = sld [smem:[#allocation4 + $0x3e]]
        %v1135 = vstv %s1134
        %v1136 = vmul.f32 %v1135, %v313
        %1138 = vrot.lane.b32.xlu0 %v1136, 112
        %v1139 = vpop.permute.xlu0 %1138
        %v1140 = vrot.slane %v1139, 1
        %v1141 = vsel %vm308, %v1139, %v1140
        %v1143 = vadd.f32 %v1123, %v1141
        %s1144 = sld [smem:[#allocation4 + $0x14]]
        %v1145 = vstv %s1144
        %v1146 = vmul.f32 %v1145, %v301
        %1148 = vrot.lane.b32.xlu0 %v1146, 96
        %v1149 = vpop.permute.xlu0 %1148
        %v1150 = vrot.slane %v1149, 1
        %v1151 = vsel %vm330, %v1149, %v1150
        %v1153 = vadd.f32 %v1133, %v1151
        %s1154 = sld [smem:[#allocation4 + $0x45]]
        %v1155 = vstv %s1154
        %v1156 = vmul.f32 %v1155, %v313
        %1158 = vrot.lane.b32.xlu0 %v1156, 96
        %v1159 = vpop.permute.xlu0 %1158
        %v1160 = vrot.slane %v1159, 1
        %v1161 = vsel %vm330, %v1159, %v1160
        %v1163 = vadd.f32 %v1143, %v1161
        %s1164 = sld [smem:[#allocation4 + $0x1b]]
        %v1165 = vstv %s1164
        %v1166 = vmul.f32 %v1165, %v301
        %1168 = vrot.lane.b32.xlu0 %v1166, 80
        %v1169 = vpop.permute.xlu0 %1168
        %v1170 = vrot.slane %v1169, 1
        %v1171 = vsel %vm351, %v1169, %v1170
        %v1173 = vadd.f32 %v1153, %v1171
        %s1174 = sld [smem:[#allocation4 + $0x4c]]
        %v1175 = vstv %s1174
        %v1176 = vmul.f32 %v1175, %v313
        %1178 = vrot.lane.b32.xlu0 %v1176, 80
        %v1179 = vpop.permute.xlu0 %1178
        %v1180 = vrot.slane %v1179, 1
        %v1181 = vsel %vm351, %v1179, %v1180
        %v1183 = vadd.f32 %v1163, %v1181
        %s1184 = sld [smem:[#allocation4 + $0x22]]
        %v1185 = vstv %s1184
        %v1186 = vmul.f32 %v1185, %v301
        %1188 = vrot.lane.b32.xlu0 %v1186, 64
        %v1189 = vpop.permute.xlu0 %1188
        %v1190 = vrot.slane %v1189, 1
        %v1191 = vsel %vm372, %v1189, %v1190
        %v1193 = vadd.f32 %v1173, %v1191
        %s1194 = sld [smem:[#allocation4 + $0x53]]
        %v1195 = vstv %s1194
        %v1196 = vmul.f32 %v1195, %v313
        %1198 = vrot.lane.b32.xlu0 %v1196, 64
        %v1199 = vpop.permute.xlu0 %1198
        %v1200 = vrot.slane %v1199, 1
        %v1201 = vsel %vm372, %v1199, %v1200
        %v1203 = vadd.f32 %v1183, %v1201
        %s1204 = sld [smem:[#allocation4 + $0x29]]
        %v1205 = vstv %s1204
        %v1206 = vmul.f32 %v1205, %v301
        %1208 = vrot.lane.b32.xlu0 %v1206, 48
        %v1209 = vpop.permute.xlu0 %1208
        %v1210 = vrot.slane %v1209, 1
        %v1211 = vsel %vm393, %v1209, %v1210
        %v1213 = vadd.f32 %v1193, %v1211
        %s1214 = sld [smem:[#allocation4 + $0x5a]]
        %v1215 = vstv %s1214
        %v1216 = vmul.f32 %v1215, %v313
        %1218 = vrot.lane.b32.xlu0 %v1216, 48
        %v1219 = vpop.permute.xlu0 %1218
        %v1220 = vrot.slane %v1219, 1
        %v1221 = vsel %vm393, %v1219, %v1220
        %v1223 = vadd.f32 %v1203, %v1221
        %s1224 = sld [smem:[#allocation4 + $0x30]]
        %v1225 = vstv %s1224
        %v1226 = vmul.f32 %v1225, %v301
        %1228 = vrot.lane.b32.xlu0 %v1226, 32
        %v1229 = vpop.permute.xlu0 %1228
        %v1230 = vrot.slane %v1229, 1
        %v1231 = vsel %vm414, %v1229, %v1230
        %v1233 = vadd.f32 %v1213, %v1231
        %s1234 = sld [smem:[#allocation4 + $0x61]]
        %v1235 = vstv %s1234
        %v1236 = vmul.f32 %v1235, %v313
        %1238 = vrot.lane.b32.xlu0 %v1236, 32
        %v1239 = vpop.permute.xlu0 %1238
        %v1240 = vrot.slane %v1239, 1
        %v1241 = vsel %vm414, %v1239, %v1240
        %v1243 = vadd.f32 %v1223, %v1241
        %v1244 = vadd.f32 %v1233, %v1243
        %s1245 = scalar_lea.vmem [#allocation8], 6
        %v1246 = vld [vmem:[%s1245] ss:$8 sm:$0x3]
        %1248 = vrot.lane.b32.xlu0 %v1246, 6
        %v1249 = vpop.permute.xlu0 %1248
        %v1250 = vrot.slane %v1249, 7
        %vm1251 = vcmask 48128
        %v1252 = vsel %vm1251, %v1250, %v1249
        %v1254 = vmul.f32 %v1244, %v1252
        %1256 = vrot.lane.b32.xlu0 %v569, 127
        %v1257 = vpop.permute.xlu0 %1256
        %v1258 = vrot.slane %v1257, 1
        %vm1259 = vcmask 1039360
        %v1260 = vsel %vm1259, %v1257, %v1258
        %v1262 = vadd.f32 %v430, %v1260
        %1264 = vrot.lane.b32.xlu0 %v837, 127
        %v1265 = vpop.permute.xlu0 %1264
        %v1266 = vrot.slane %v1265, 1
        %v1267 = vsel %vm1259, %v1265, %v1266
        %v1269 = vadd.f32 %v708, %v1267
        %1271 = vrot.lane.b32.xlu0 %v1269, 126
        %v1272 = vpop.permute.xlu0 %1271
        %v1273 = vrot.slane %v1272, 1
        %vm1274 = vcmask 1031168
        %v1275 = vsel %vm1274, %v1272, %v1273
        %v1277 = vadd.f32 %v1262, %v1275
        %1279 = vrot.lane.b32.xlu0 %v1115, 127
        %v1280 = vpop.permute.xlu0 %1279
        %v1281 = vrot.slane %v1280, 1
        %v1282 = vsel %vm1259, %v1280, %v1281
        %v1284 = vadd.f32 %v976, %v1282
        %1286 = vrot.lane.b32.xlu0 %v1254, 126
        %v1287 = vpop.permute.xlu0 %1286
        %v1288 = vrot.slane %v1287, 1
        %v1289 = vsel %vm1274, %v1287, %v1288
        %v1291 = vadd.f32 %v1284, %v1289
        %1293 = vrot.lane.b32.xlu0 %v1291, 124
        %v1294 = vpop.permute.xlu0 %1293
        %v1295 = vrot.slane %v1294, 1
        %vm1296 = vcmask 1014784
        %v1297 = vsel %vm1296, %v1294, %v1295
        %v1299 = vadd.f32 %v1277, %v1297
        %v1300 = vxor.u32 %v1299, 2147483648
        %v1301 = vmul.f32 %v1300, 1.442695
        %v1302 = vpow.pop %v1301
        %v1303 = vadd.f32 %v1302, 1.0
        %v1304 = vrcp.pop %v1303
        %v1305 = vmul.f32 %v1303, %v1304
        %v1306 = vsub.f32 1.0, %v1305
        %v1307 = vmul.f32 %v1304, %v1306
        %v1308 = vadd.f32 %v1304, %v1307
        %vm1309 = vweird.f32 %v1303
        %vm1310 = vweird.f32 %v1304
        %vm1311 = vmor %vm1309, %vm1310
        %v1312 = vsel %vm1311, %v1304, %v1308
        %v1313 = vand.u32 2147483647, %v1303
        %vm1314 = vcmp.eq.f32.partialorder %v1313, 8.507059e+37
        %v1315 = vand.u32 %v1303, 2147483648
        %v1316 = vor.u32 1.1754944e-38, %v1315
        %v1317 = vsel %vm1314, %v1316, %v1312
        %v1318 = vmul.f32 1.0, %v1317
        %v1319 = vld [vmem:[%s193] sm:$0xff]
        %v1321 = vperm.slane %v1318, 0
        %v1322 = vperm.slane %v1318, 1
        %v1323 = vrot.slane %v1322, 4
        %v1324 = vsel %vm225, %v1321, %v1323
        %v1326 = vmul.f32 %v1319, %v1324
        %1327 = vst [vmem:[%s217] sm:$0xff] %v1326
        %s1328 = sand.u32 %s98, 1
        %s1329 = scalar_lea.sflag [#allocation6], %s1328
        %s1330 = sand.u32 %s98, 1
        %s1331 = smul.addr %s1330, 8
        %s1332 = scalar_lea.vmem [#allocation11], %s1331
        // Predicated region
        $region45: #{tpu_custom_call.1} parent=31 // pred_check
          %p1333 = pneg %p108
        $region46: #{tpu_custom_call.1} parent=31 // pred_check_branch
          %1335 = sbr.rel (%p1333) target = $region48
        $region47: #{tpu_custom_call.1} parent=31 // pred_region
          %1337 = vsyncadd %s1329, 0
          %s1338 = smul.addr %s22, 2
          %s1339 = smul.addr %s1338, 4
          %s1340 = scalar_lea.hbm %s3, %s1339
          %s1342 = sshll.u32 %s1332, 4
          %s1343 = int_to_ptr.vmem [resolvable:$true] %s1342
          %s1344 = sshll.u32 %s1340, 4
          %s1345 = int_to_ptr.hbm [resolvable:$true] %s1344
          %1347 = dma.vmem_to_hbm [thread:$0]  %s1343, 128, %s1345, %s1329
        $region48: #{tpu_custom_call.1} parent=31 // pred_fallthru
          _
      $region32: #{tpu_custom_call.1} parent=5 // pred_fallthru
        _
      %p1348 = scmp.le.s32.totalorder 2, %s17
      // Predicated region
      $region49: #{tpu_custom_call.1} parent=5 // pred_check
        %p1349 = pneg %p1348
      $region50: #{tpu_custom_call.1} parent=5 // pred_check_branch
        %1351 = sbr.rel (%p1349) target = $region52
      $region51: #{tpu_custom_call.1} parent=5 // pred_region
        %s1352 = ssub.s32 %s17, 2
        // Predicated region
        $region53: #{tpu_custom_call.1} parent=51 // pred_check
          %p1353 = pneg %p114
        $region54: #{tpu_custom_call.1} parent=51 // pred_check_branch
          %1355 = sbr.rel (%p1353) target = $region56
        $region55: #{tpu_custom_call.1} parent=51 // pred_region
          %s1356 = sand.u32 %s99, 1
          %s1357 = scalar_lea.sflag [#allocation6], %s1356
          %s1358 = sand.u32 %s99, 1
          %s1359 = smul.addr %s1358, 8
          %s1360 = scalar_lea.vmem [#allocation11], %s1359
          %1362 = dma.done %s1357, 128
        $region56: #{tpu_custom_call.1} parent=51 // pred_fallthru
          _
      $region52: #{tpu_custom_call.1} parent=5 // pred_fallthru
        _
    $region6: #{tpu_custom_call.1} parent=1 // loop_footer
      %s21 = sadd.s32 1, %s17
    $region7: #{tpu_custom_call.1} parent=1 // loop_footer_branch
      %16 = sbr.rel target = $region3
    $region8: #{tpu_custom_call.1} parent=1 // loop_exit
      _
    %1363 = vsyncpa [#allocation5], 1
    %s1364 = scalar_lea.sflag [#allocation5], 1
    %1365 = vsyncpa %s1364, 1
    %1366 = vsyncpa [#allocation10], 1
    %s1367 = scalar_lea.sflag [#allocation10], 1
    %1368 = vsyncpa %s1367, 1
    %1369 = vsyncpa [#allocation6], 1
    %s1370 = scalar_lea.sflag [#allocation6], 1
    %1371 = vsyncpa %s1370, 1
    %1372 = vsyncpa [#allocation7], 1
    %s1373 = scalar_lea.sflag [#allocation7], 1
    %1374 = vsyncpa %s1373, 1

</llo_original>
